<compile_context>
chip_gen: v5e
topology: v5e:2x2
jax: 0.10.0
libtpu: 0.0.40
codegen_flags: <defaults>
</compile_context>

<pallas_src>
import jax
import jax.numpy as jnp
from jax import lax
from jax.experimental import pallas as pl
from jax.experimental.pallas import tpu as pltpu


# ------------------------------ helpers ------------------------------------
def _round_up(x, m):
    return ((x + m - 1) // m) * m


def _pick_tblk(T, max_blk):
    for cand in range(min(T, max_blk), 0, -1):
        if T % cand == 0:
            return cand
    return 1


# ----------------------------- Pallas kernel -------------------------------
def _lstm_gate_math(gates, c, Hpad):
    # PyTorch gate order: i, f, g, o.  Each gate occupies its own 128-lane
    # aligned block of width Hpad, so these slices are lane-aligned.
    i = jax.nn.sigmoid(gates[:, 0 * Hpad:1 * Hpad])
    f = jax.nn.sigmoid(gates[:, 1 * Hpad:2 * Hpad])
    g = jnp.tanh(gates[:, 2 * Hpad:3 * Hpad])
    o = jax.nn.sigmoid(gates[:, 3 * Hpad:4 * Hpad])
    c_new = f * c + i * g
    h_new = o * jnp.tanh(c_new)
    return h_new, c_new


def lm_kernel(emb_ref,        # (Tblk, Bpad, Dpad)   streamed time-block
              wih_f_ref,      # (Dpad, 4*Hpad)
              whh_f_ref,      # (Hpad, 4*Hpad)
              b_f_ref,        # (1, 4*Hpad)          (b_ih + b_hh), padded
              wih_r_ref,      # (Dpad, 4*Hpad)       reverse direction
              b_r_ref,        # (1, 4*Hpad)
              wcls_ref,       # (2*Hpad, Vpad)
              bcls_ref,       # (1, Vpad)
              out_ref,        # (Bpad, Vpad)         lane-dense logits
              gx_scr,         # VMEM (Tblk, Bpad, 4*Hpad)
              h_scr,          # VMEM (Bpad, Hpad)    forward h carry
              c_scr):         # VMEM (Bpad, Hpad)    forward c carry
    t_blk = pl.program_id(0)
    n_blk = pl.num_programs(0)

    Tblk, Bpad, Dpad = emb_ref.shape
    Hpad = h_scr.shape[-1]

    @pl.when(t_blk == 0)
    def _init():
        h_scr[...] = jnp.zeros_like(h_scr)
        c_scr[...] = jnp.zeros_like(c_scr)

    # --- Hoisted input projection: one large MXU matmul per time-block,
    #     bias folded in once (no per-step broadcast). ----------------------
    x_blk = emb_ref[...].reshape(Tblk * Bpad, Dpad)
    gates_x = (jnp.dot(x_blk, wih_f_ref[...],
                       preferred_element_type=jnp.float32)
               + b_f_ref[...])
    gx_scr[...] = gates_x.reshape(Tblk, Bpad, 4 * Hpad)

    # --- Serial recurrence: only h @ W_hh sits on the critical path. -------
    whh_f = whh_f_ref[...]

    def step(t, carry):
        h, c = carry
        gates = gx_scr[t] + jnp.dot(h, whh_f,
                                    preferred_element_type=jnp.float32)
        return _lstm_gate_math(gates, c, Hpad)

    h, c = lax.fori_loop(0, Tblk, step, (h_scr[...], c_scr[...]), unroll=True)
    h_scr[...] = h
    c_scr[...] = c

    # --- Final block: reverse direction (one step from zero state) and
    #     classifier, stored as a lane-dense (Bpad, Vpad) tile. -------------
    @pl.when(t_blk == n_blk - 1)
    def _finalize():
        x_last = emb_ref[Tblk - 1]                              # (Bpad, Dpad)
        gates_r = (jnp.dot(x_last, wih_r_ref[...],
                           preferred_element_type=jnp.float32)
                   + b_r_ref[...])                              # h0 == 0: no h @ W_hh_r
        zeros = jnp.zeros((Bpad, Hpad), jnp.float32)
        h_rev, _ = _lstm_gate_math(gates_r, zeros, Hpad)
        feat = jnp.concatenate([h_scr[...], h_rev], axis=-1)    # (Bpad, 2*Hpad)
        out_ref[...] = (jnp.dot(feat, wcls_ref[...],
                                preferred_element_type=jnp.float32)
                        + bcls_ref[...])


# ------------------------- parameter padding -------------------------------
def _pad_gate_cols(w, H, Hpad):
    """(rows, 4H) -> (rows, 4*Hpad); gate k placed at cols [k*Hpad, k*Hpad+H)."""
    parts = []
    for k in range(4):
        parts.append(jnp.pad(w[:, k * H:(k + 1) * H],
                             ((0, 0), (0, Hpad - H))))
    return jnp.concatenate(parts, axis=-1)


def _pad_params(params, D, H, V, Dpad, Hpad, Vpad):
    f32 = jnp.float32

    def pad_rows(w, rpad):
        return jnp.pad(w, ((0, rpad - w.shape[0]), (0, 0)))

    out = {
        "wih_f": pad_rows(_pad_gate_cols(params["wih_f"].astype(f32), H, Hpad), Dpad),
        "whh_f": pad_rows(_pad_gate_cols(params["whh_f"].astype(f32), H, Hpad), Hpad),
        "b_f": _pad_gate_cols(params["b_f"].astype(f32), H, Hpad),
        "wih_r": pad_rows(_pad_gate_cols(params["wih_r"].astype(f32), H, Hpad), Dpad),
        "b_r": _pad_gate_cols(params["b_r"].astype(f32), H, Hpad),
    }
    w_cls = params["w_cls"].astype(f32)                 # (2H, V)
    w_cls_p = jnp.zeros((2 * Hpad, Vpad), f32)
    w_cls_p = w_cls_p.at[:H, :V].set(w_cls[:H])         # forward-h rows
    w_cls_p = w_cls_p.at[Hpad:Hpad + H, :V].set(w_cls[H:])  # reverse-h rows
    out["w_cls"] = w_cls_p
    out["b_cls"] = jnp.zeros((1, Vpad), f32).at[:, :V].set(
        params["b_cls"].astype(f32))
    return out


# ------------------------------- wrapper ------------------------------------
def language_model_forward(x_ids, params, *, t_block=4):
    """x_ids: (B, T) int32 token ids.  Returns logits (B, V)."""
    B, T = x_ids.shape
    D = params["emb"].shape[1]
    H = params["whh_f"].shape[0]
    V = params["b_cls"].shape[-1]

    LANE, SUB = 128, 8
    Bpad = _round_up(max(B, SUB), SUB)
    Dpad = _round_up(D, LANE)
    Hpad = _round_up(H, LANE)
    Vpad = _round_up(V, LANE)
    # For production, size Tblk by VMEM budget (halve on v7x's 64 MiB VMEM).
    Tblk = _pick_tblk(T, t_block)

    # Embedding gather (XLA glue), time-major padded layout (T, Bpad, Dpad).
    emb = jnp.take(params["emb"], x_ids, axis=0)                 # (B, T, D)
    emb_tbd = jnp.transpose(emb, (1, 0, 2)).astype(jnp.float32)  # (T, B, D)
    emb_pad = jnp.zeros((T, Bpad, Dpad), jnp.float32).at[:, :B, :D].set(emb_tbd)

    pp = _pad_params(params, D, H, V, Dpad, Hpad, Vpad)

    const2 = lambda t: (0, 0)
    out_pad = pl.pallas_call(
        lm_kernel,
        out_shape=jax.ShapeDtypeStruct((Bpad, Vpad), jnp.float32),
        grid_spec=pltpu.PrefetchScalarGridSpec(
            num_scalar_prefetch=0,
            grid=(T // Tblk,),
            in_specs=[
                pl.BlockSpec((Tblk, Bpad, Dpad), lambda t: (t, 0, 0)),
                pl.BlockSpec((Dpad, 4 * Hpad), const2),
                pl.BlockSpec((Hpad, 4 * Hpad), const2),
                pl.BlockSpec((1, 4 * Hpad), const2),
                pl.BlockSpec((Dpad, 4 * Hpad), const2),
                pl.BlockSpec((1, 4 * Hpad), const2),
                pl.BlockSpec((2 * Hpad, Vpad), const2),
                pl.BlockSpec((1, Vpad), const2),
            ],
            out_specs=pl.BlockSpec((Bpad, Vpad), const2),
            scratch_shapes=[
                pltpu.VMEM((Tblk, Bpad, 4 * Hpad), jnp.float32),  # hoisted gates_x
                pltpu.VMEM((Bpad, Hpad), jnp.float32),            # h carry
                pltpu.VMEM((Bpad, Hpad), jnp.float32),            # c carry
            ]),
        compiler_params=pltpu.CompilerParams(
            dimension_semantics=("arbitrary",),      # time axis is a recurrence
            vmem_limit_bytes=32 * 1024 * 1024),
    )(emb_pad,
      pp["wih_f"], pp["whh_f"], pp["b_f"],
      pp["wih_r"], pp["b_r"],
      pp["w_cls"], pp["b_cls"])

    return out_pad[:B, :V]   # strip batch / vocab padding


# ------------------------- pure-JAX reference ------------------------------
def language_model_reference(x_ids, params):
    emb = jnp.take(params["emb"], x_ids, axis=0)           # (B, T, D)
    B, T, D = emb.shape
    H = D

    def cell(x_t, h, c, wih, whh, b):
        gates = x_t @ wih + h @ whh + b
        i = jax.nn.sigmoid(gates[:, 0 * H:1 * H])
        f = jax.nn.sigmoid(gates[:, 1 * H:2 * H])
        g = jnp.tanh(gates[:, 2 * H:3 * H])
        o = jax.nn.sigmoid(gates[:, 3 * H:4 * H])
        c = f * c + i * g
        h = o * jnp.tanh(c)
        return h, c

    h = jnp.zeros((B, H), jnp.float32)
    c = jnp.zeros((B, H), jnp.float32)
    for t in range(T):
        h, c = cell(emb[:, t], h, c,
                    params["wih_f"], params["whh_f"], params["b_f"])
    h_fwd_last = h

    # Full reverse pass; its output at time index T-1 is its first step.
    h = jnp.zeros((B, H), jnp.float32)
    c = jnp.zeros((B, H), jnp.float32)
    rev_outs = {}
    for t in range(T - 1, -1, -1):
        h, c = cell(emb[:, t], h, c,
                    params["wih_r"], params["whh_r"], params["b_r"])
        rev_outs[t] = h
    h_rev_last = rev_outs[T - 1]

    feat = jnp.concatenate([h_fwd_last, h_rev_last], axis=-1)
    return feat @ params["w_cls"] + params["b_cls"]


# --------------------------- parameter init --------------------------------
def init_params(key, vocab_size, vector_dim):
    V = vocab_size + 1          # len(vocab) + 1
    D = H = vector_dim
    k_lstm = 1.0 / (H ** 0.5)
    k_cls = 1.0 / ((2 * H) ** 0.5)
    keys = jax.random.split(key, 12)

    def u(k, shape, bound):
        return jax.random.uniform(k, shape, jnp.float32, -bound, bound)

    params = {
        "emb": jax.random.normal(keys[0], (V, D), jnp.float32),
        # forward direction (stored pre-transposed: (in, 4H))
        "wih_f": u(keys[1], (D, 4 * H), k_lstm),
        "whh_f": u(keys[2], (H, 4 * H), k_lstm),
        "b_f": u(keys[3], (1, 4 * H), k_lstm) + u(keys[4], (1, 4 * H), k_lstm),
        # reverse direction (whh_r only used by the reference: the kernel
        # exploits h0 == 0 at the last timestep so h0 @ whh_r vanishes)
        "wih_r": u(keys[5], (D, 4 * H), k_lstm),
        "whh_r": u(keys[6], (H, 4 * H), k_lstm),
        "b_r": u(keys[7], (1, 4 * H), k_lstm) + u(keys[8], (1, 4 * H), k_lstm),
        # classifier (stored pre-transposed: (2H, V))
        "w_cls": u(keys[9], (2 * H, V), k_cls),
        "b_cls": u(keys[10], (1, V), k_cls),
    }
    return params


if __name__ == "__main__":
    VOCAB_SIZE = 20          # len(vocab); model predicts over VOCAB_SIZE + 1 = 21 classes
    VECTOR_DIM = 32
    BATCH = 2
    SEQ = 8

    key = jax.random.PRNGKey(0)
    k_params, k_ids = jax.random.split(key)
    params = init_params(k_params, VOCAB_SIZE, VECTOR_DIM)

    x_ids = jax.random.randint(k_ids, (BATCH, SEQ), 0, VOCAB_SIZE + 1,
                               dtype=jnp.int32)

    logits = language_model_forward(x_ids, params)
    logits = jax.block_until_ready(logits)

    ref = language_model_reference(x_ids, params)
    assert logits.shape == (BATCH, VOCAB_SIZE + 1), logits.shape
    if not jnp.allclose(logits, ref, atol=1e-3, rtol=1e-3):
        raise AssertionError("Pallas kernel does not match JAX reference")

    print("KERNEL_OK")
</pallas_src>

<mosaic_0001>
module attributes {stable_mosaic.version = 11 : i64} {
  func.func @lm_kernel(%arg0: i32, %arg1: memref<4x8x128xf32, #tpu.memory_space<vmem>>, %arg2: memref<128x512xf32, #tpu.memory_space<vmem>>, %arg3: memref<128x512xf32, #tpu.memory_space<vmem>>, %arg4: memref<1x512xf32, #tpu.memory_space<vmem>>, %arg5: memref<128x512xf32, #tpu.memory_space<vmem>>, %arg6: memref<1x512xf32, #tpu.memory_space<vmem>>, %arg7: memref<256x128xf32, #tpu.memory_space<vmem>>, %arg8: memref<1x128xf32, #tpu.memory_space<vmem>>, %arg9: memref<8x128xf32, #tpu.memory_space<vmem>>, %arg10: memref<4x8x512xf32, #tpu.memory_space<vmem>>, %arg11: memref<8x128xf32, #tpu.memory_space<vmem>>, %arg12: memref<8x128xf32, #tpu.memory_space<vmem>>) attributes {dimension_semantics = [#tpu.dimension_semantics<arbitrary>], iteration_bounds = array<i64: 2>, scalar_prefetch = 0 : i64, scratch_operands = 3 : i64, tpu.core_type = #tpu.core_type<tc>, window_params = [{transform_indices = @transform_0, window_bounds = array<i64: 4, 8, 128>}, {pipeline_mode = #tpu.pipeline_mode<synchronous>, transform_indices = @transform_1, window_bounds = array<i64: 128, 512>}, {pipeline_mode = #tpu.pipeline_mode<synchronous>, transform_indices = @transform_2, window_bounds = array<i64: 128, 512>}, {pipeline_mode = #tpu.pipeline_mode<synchronous>, transform_indices = @transform_3, window_bounds = array<i64: 1, 512>}, {pipeline_mode = #tpu.pipeline_mode<synchronous>, transform_indices = @transform_4, window_bounds = array<i64: 128, 512>}, {pipeline_mode = #tpu.pipeline_mode<synchronous>, transform_indices = @transform_5, window_bounds = array<i64: 1, 512>}, {pipeline_mode = #tpu.pipeline_mode<synchronous>, transform_indices = @transform_6, window_bounds = array<i64: 256, 128>}, {pipeline_mode = #tpu.pipeline_mode<synchronous>, transform_indices = @transform_7, window_bounds = array<i64: 1, 128>}, {pipeline_mode = #tpu.pipeline_mode<synchronous>, transform_indices = @transform_8, window_bounds = array<i64: 8, 128>}]} {
    %c0_i32 = arith.constant 0 : i32
    %0 = arith.cmpi eq, %arg0, %c0_i32 : i32
    %1 = arith.extui %0 : i1 to i32
    %c0_i32_0 = arith.constant 0 : i32
    %2 = arith.cmpi ne, %1, %c0_i32_0 : i32
    scf.if %2 {
      %cst_47 = arith.constant 0.000000e+00 : f32
      %140 = vector.broadcast %cst_47 : f32 to vector<8x128xf32>
      %c0_48 = arith.constant 0 : index
      %c0_49 = arith.constant 0 : index
      %141 = vector.load %arg11[%c0_48, %c0_49] : memref<8x128xf32, #tpu.memory_space<vmem>>, vector<8x128xf32>
      tpu.vector_store %arg11[%c0_48, %c0_49], %140 {strides = array<i32>} : memref<8x128xf32, #tpu.memory_space<vmem>>, vector<8x128xf32>,
      %cst_50 = arith.constant 0.000000e+00 : f32
      %142 = vector.broadcast %cst_50 : f32 to vector<8x128xf32>
      %c0_51 = arith.constant 0 : index
      %c0_52 = arith.constant 0 : index
      %143 = vector.load %arg12[%c0_51, %c0_52] : memref<8x128xf32, #tpu.memory_space<vmem>>, vector<8x128xf32>
      tpu.vector_store %arg12[%c0_51, %c0_52], %142 {strides = array<i32>} : memref<8x128xf32, #tpu.memory_space<vmem>>, vector<8x128xf32>,
    } else {
    }
    %c0 = arith.constant 0 : index
    %c0_1 = arith.constant 0 : index
    %c0_2 = arith.constant 0 : index
    %3 = vector.load %arg1[%c0, %c0_1, %c0_2] : memref<4x8x128xf32, #tpu.memory_space<vmem>>, vector<4x8x128xf32>
    %4 = vector.shape_cast %3 : vector<4x8x128xf32> to vector<32x128xf32>
    %c0_3 = arith.constant 0 : index
    %c0_4 = arith.constant 0 : index
    %5 = vector.load %arg2[%c0_3, %c0_4] : memref<128x512xf32, #tpu.memory_space<vmem>>, vector<128x512xf32>
    %cst = arith.constant dense<0.000000e+00> : vector<32x512xf32>
    %6 = tpu.matmul %4, %5, %cst {dimension_numbers = #tpu.dot_dimension_numbers<[1], [0], [0], [1], [0, 0, 1, 1], [], []>} : vector<32x128xf32>, vector<128x512xf32>, vector<32x512xf32> -> vector<32x512xf32>
    %c0_5 = arith.constant 0 : index
    %c0_6 = arith.constant 0 : index
    %7 = vector.load %arg4[%c0_5, %c0_6] : memref<1x512xf32, #tpu.memory_space<vmem>>, vector<1x512xf32>
    %8 = vector.broadcast %7 : vector<1x512xf32> to vector<32x512xf32>
    %9 = arith.addf %6, %8 : vector<32x512xf32>
    %10 = vector.shape_cast %9 : vector<32x512xf32> to vector<4x8x512xf32>
    %c0_7 = arith.constant 0 : index
    %c0_8 = arith.constant 0 : index
    %c0_9 = arith.constant 0 : index
    %11 = vector.load %arg10[%c0_7, %c0_8, %c0_9] : memref<4x8x512xf32, #tpu.memory_space<vmem>>, vector<4x8x512xf32>
    tpu.vector_store %arg10[%c0_7, %c0_8, %c0_9], %10 {strides = array<i32>} : memref<4x8x512xf32, #tpu.memory_space<vmem>>, vector<4x8x512xf32>,
    %c0_10 = arith.constant 0 : index
    %c0_11 = arith.constant 0 : index
    %12 = vector.load %arg3[%c0_10, %c0_11] : memref<128x512xf32, #tpu.memory_space<vmem>>, vector<128x512xf32>
    %c0_12 = arith.constant 0 : index
    %c0_13 = arith.constant 0 : index
    %13 = vector.load %arg11[%c0_12, %c0_13] : memref<8x128xf32, #tpu.memory_space<vmem>>, vector<8x128xf32>
    %c0_14 = arith.constant 0 : index
    %c0_15 = arith.constant 0 : index
    %14 = vector.load %arg12[%c0_14, %c0_15] : memref<8x128xf32, #tpu.memory_space<vmem>>, vector<8x128xf32>
    %c0_i32_16 = arith.constant 0 : i32
    %15 = arith.index_cast %c0_i32_16 : i32 to index
    %c0_17 = arith.constant 0 : index
    %c0_18 = arith.constant 0 : index
    %16 = vector.load %arg10[%15, %c0_17, %c0_18] : memref<4x8x512xf32, #tpu.memory_space<vmem>>, vector<1x8x512xf32>
    %17 = vector.shape_cast %16 : vector<1x8x512xf32> to vector<8x512xf32>
    %cst_19 = arith.constant dense<0.000000e+00> : vector<8x512xf32>
    %18 = tpu.matmul %13, %12, %cst_19 {dimension_numbers = #tpu.dot_dimension_numbers<[1], [0], [0], [1], [0, 0, 1, 1], [], []>} : vector<8x128xf32>, vector<128x512xf32>, vector<8x512xf32> -> vector<8x512xf32>
    %19 = arith.addf %17, %18 : vector<8x512xf32>
    %20 = vector.extract_strided_slice %19 {offsets = [0, 0], sizes = [8, 128], strides = [1, 1]} : vector<8x512xf32> to vector<8x128xf32>
    %21 = arith.negf %20 : vector<8x128xf32>
    %22 = math.exp %21 : vector<8x128xf32>
    %cst_20 = arith.constant 1.000000e+00 : f32
    %23 = vector.broadcast %cst_20 : f32 to vector<8x128xf32>
    %24 = arith.addf %23, %22 : vector<8x128xf32>
    %25 = arith.divf %23, %24 : vector<8x128xf32>
    %26 = vector.extract_strided_slice %19 {offsets = [0, 128], sizes = [8, 128], strides = [1, 1]} : vector<8x512xf32> to vector<8x128xf32>
    %27 = arith.negf %26 : vector<8x128xf32>
    %28 = math.exp %27 : vector<8x128xf32>
    %cst_21 = arith.constant 1.000000e+00 : f32
    %29 = vector.broadcast %cst_21 : f32 to vector<8x128xf32>
    %30 = arith.addf %29, %28 : vector<8x128xf32>
    %31 = arith.divf %29, %30 : vector<8x128xf32>
    %32 = vector.extract_strided_slice %19 {offsets = [0, 256], sizes = [8, 128], strides = [1, 1]} : vector<8x512xf32> to vector<8x128xf32>
    %33 = math.tanh %32 : vector<8x128xf32>
    %34 = vector.extract_strided_slice %19 {offsets = [0, 384], sizes = [8, 128], strides = [1, 1]} : vector<8x512xf32> to vector<8x128xf32>
    %35 = arith.negf %34 : vector<8x128xf32>
    %36 = math.exp %35 : vector<8x128xf32>
    %cst_22 = arith.constant 1.000000e+00 : f32
    %37 = vector.broadcast %cst_22 : f32 to vector<8x128xf32>
    %38 = arith.addf %37, %36 : vector<8x128xf32>
    %39 = arith.divf %37, %38 : vector<8x128xf32>
    %40 = arith.mulf %31, %14 : vector<8x128xf32>
    %41 = arith.mulf %25, %33 : vector<8x128xf32>
    %42 = arith.addf %40, %41 : vector<8x128xf32>
    %43 = math.tanh %42 : vector<8x128xf32>
    %44 = arith.mulf %39, %43 : vector<8x128xf32>
    %c1_i32 = arith.constant 1 : i32
    %45 = arith.index_cast %c1_i32 : i32 to index
    %c0_23 = arith.constant 0 : index
    %c0_24 = arith.constant 0 : index
    %46 = vector.load %arg10[%45, %c0_23, %c0_24] : memref<4x8x512xf32, #tpu.memory_space<vmem>>, vector<1x8x512xf32>
    %47 = vector.shape_cast %46 : vector<1x8x512xf32> to vector<8x512xf32>
    %cst_25 = arith.constant dense<0.000000e+00> : vector<8x512xf32>
    %48 = tpu.matmul %44, %12, %cst_25 {dimension_numbers = #tpu.dot_dimension_numbers<[1], [0], [0], [1], [0, 0, 1, 1], [], []>} : vector<8x128xf32>, vector<128x512xf32>, vector<8x512xf32> -> vector<8x512xf32>
    %49 = arith.addf %47, %48 : vector<8x512xf32>
    %50 = vector.extract_strided_slice %49 {offsets = [0, 0], sizes = [8, 128], strides = [1, 1]} : vector<8x512xf32> to vector<8x128xf32>
    %51 = arith.negf %50 : vector<8x128xf32>
    %52 = math.exp %51 : vector<8x128xf32>
    %cst_26 = arith.constant 1.000000e+00 : f32
    %53 = vector.broadcast %cst_26 : f32 to vector<8x128xf32>
    %54 = arith.addf %53, %52 : vector<8x128xf32>
    %55 = arith.divf %53, %54 : vector<8x128xf32>
    %56 = vector.extract_strided_slice %49 {offsets = [0, 128], sizes = [8, 128], strides = [1, 1]} : vector<8x512xf32> to vector<8x128xf32>
    %57 = arith.negf %56 : vector<8x128xf32>
    %58 = math.exp %57 : vector<8x128xf32>
    %cst_27 = arith.constant 1.000000e+00 : f32
    %59 = vector.broadcast %cst_27 : f32 to vector<8x128xf32>
    %60 = arith.addf %59, %58 : vector<8x128xf32>
    %61 = arith.divf %59, %60 : vector<8x128xf32>
    %62 = vector.extract_strided_slice %49 {offsets = [0, 256], sizes = [8, 128], strides = [1, 1]} : vector<8x512xf32> to vector<8x128xf32>
    %63 = math.tanh %62 : vector<8x128xf32>
    %64 = vector.extract_strided_slice %49 {offsets = [0, 384], sizes = [8, 128], strides = [1, 1]} : vector<8x512xf32> to vector<8x128xf32>
    %65 = arith.negf %64 : vector<8x128xf32>
    %66 = math.exp %65 : vector<8x128xf32>
    %cst_28 = arith.constant 1.000000e+00 : f32
    %67 = vector.broadcast %cst_28 : f32 to vector<8x128xf32>
    %68 = arith.addf %67, %66 : vector<8x128xf32>
    %69 = arith.divf %67, %68 : vector<8x128xf32>
    %70 = arith.mulf %61, %42 : vector<8x128xf32>
    %71 = arith.mulf %55, %63 : vector<8x128xf32>
    %72 = arith.addf %70, %71 : vector<8x128xf32>
    %73 = math.tanh %72 : vector<8x128xf32>
    %74 = arith.mulf %69, %73 : vector<8x128xf32>
    %c2_i32 = arith.constant 2 : i32
    %75 = arith.index_cast %c2_i32 : i32 to index
    %c0_29 = arith.constant 0 : index
    %c0_30 = arith.constant 0 : index
    %76 = vector.load %arg10[%75, %c0_29, %c0_30] : memref<4x8x512xf32, #tpu.memory_space<vmem>>, vector<1x8x512xf32>
    %77 = vector.shape_cast %76 : vector<1x8x512xf32> to vector<8x512xf32>
    %cst_31 = arith.constant dense<0.000000e+00> : vector<8x512xf32>
    %78 = tpu.matmul %74, %12, %cst_31 {dimension_numbers = #tpu.dot_dimension_numbers<[1], [0], [0], [1], [0, 0, 1, 1], [], []>} : vector<8x128xf32>, vector<128x512xf32>, vector<8x512xf32> -> vector<8x512xf32>
    %79 = arith.addf %77, %78 : vector<8x512xf32>
    %80 = vector.extract_strided_slice %79 {offsets = [0, 0], sizes = [8, 128], strides = [1, 1]} : vector<8x512xf32> to vector<8x128xf32>
    %81 = arith.negf %80 : vector<8x128xf32>
    %82 = math.exp %81 : vector<8x128xf32>
    %cst_32 = arith.constant 1.000000e+00 : f32
    %83 = vector.broadcast %cst_32 : f32 to vector<8x128xf32>
    %84 = arith.addf %83, %82 : vector<8x128xf32>
    %85 = arith.divf %83, %84 : vector<8x128xf32>
    %86 = vector.extract_strided_slice %79 {offsets = [0, 128], sizes = [8, 128], strides = [1, 1]} : vector<8x512xf32> to vector<8x128xf32>
    %87 = arith.negf %86 : vector<8x128xf32>
    %88 = math.exp %87 : vector<8x128xf32>
    %cst_33 = arith.constant 1.000000e+00 : f32
    %89 = vector.broadcast %cst_33 : f32 to vector<8x128xf32>
    %90 = arith.addf %89, %88 : vector<8x128xf32>
    %91 = arith.divf %89, %90 : vector<8x128xf32>
    %92 = vector.extract_strided_slice %79 {offsets = [0, 256], sizes = [8, 128], strides = [1, 1]} : vector<8x512xf32> to vector<8x128xf32>
    %93 = math.tanh %92 : vector<8x128xf32>
    %94 = vector.extract_strided_slice %79 {offsets = [0, 384], sizes = [8, 128], strides = [1, 1]} : vector<8x512xf32> to vector<8x128xf32>
    %95 = arith.negf %94 : vector<8x128xf32>
    %96 = math.exp %95 : vector<8x128xf32>
    %cst_34 = arith.constant 1.000000e+00 : f32
    %97 = vector.broadcast %cst_34 : f32 to vector<8x128xf32>
    %98 = arith.addf %97, %96 : vector<8x128xf32>
    %99 = arith.divf %97, %98 : vector<8x128xf32>
    %100 = arith.mulf %91, %72 : vector<8x128xf32>
    %101 = arith.mulf %85, %93 : vector<8x128xf32>
    %102 = arith.addf %100, %101 : vector<8x128xf32>
    %103 = math.tanh %102 : vector<8x128xf32>
    %104 = arith.mulf %99, %103 : vector<8x128xf32>
    %c3_i32 = arith.constant 3 : i32
    %105 = arith.index_cast %c3_i32 : i32 to index
    %c0_35 = arith.constant 0 : index
    %c0_36 = arith.constant 0 : index
    %106 = vector.load %arg10[%105, %c0_35, %c0_36] : memref<4x8x512xf32, #tpu.memory_space<vmem>>, vector<1x8x512xf32>
    %107 = vector.shape_cast %106 : vector<1x8x512xf32> to vector<8x512xf32>
    %cst_37 = arith.constant dense<0.000000e+00> : vector<8x512xf32>
    %108 = tpu.matmul %104, %12, %cst_37 {dimension_numbers = #tpu.dot_dimension_numbers<[1], [0], [0], [1], [0, 0, 1, 1], [], []>} : vector<8x128xf32>, vector<128x512xf32>, vector<8x512xf32> -> vector<8x512xf32>
    %109 = arith.addf %107, %108 : vector<8x512xf32>
    %110 = vector.extract_strided_slice %109 {offsets = [0, 0], sizes = [8, 128], strides = [1, 1]} : vector<8x512xf32> to vector<8x128xf32>
    %111 = arith.negf %110 : vector<8x128xf32>
    %112 = math.exp %111 : vector<8x128xf32>
    %cst_38 = arith.constant 1.000000e+00 : f32
    %113 = vector.broadcast %cst_38 : f32 to vector<8x128xf32>
    %114 = arith.addf %113, %112 : vector<8x128xf32>
    %115 = arith.divf %113, %114 : vector<8x128xf32>
    %116 = vector.extract_strided_slice %109 {offsets = [0, 128], sizes = [8, 128], strides = [1, 1]} : vector<8x512xf32> to vector<8x128xf32>
    %117 = arith.negf %116 : vector<8x128xf32>
    %118 = math.exp %117 : vector<8x128xf32>
    %cst_39 = arith.constant 1.000000e+00 : f32
    %119 = vector.broadcast %cst_39 : f32 to vector<8x128xf32>
    %120 = arith.addf %119, %118 : vector<8x128xf32>
    %121 = arith.divf %119, %120 : vector<8x128xf32>
    %122 = vector.extract_strided_slice %109 {offsets = [0, 256], sizes = [8, 128], strides = [1, 1]} : vector<8x512xf32> to vector<8x128xf32>
    %123 = math.tanh %122 : vector<8x128xf32>
    %124 = vector.extract_strided_slice %109 {offsets = [0, 384], sizes = [8, 128], strides = [1, 1]} : vector<8x512xf32> to vector<8x128xf32>
    %125 = arith.negf %124 : vector<8x128xf32>
    %126 = math.exp %125 : vector<8x128xf32>
    %cst_40 = arith.constant 1.000000e+00 : f32
    %127 = vector.broadcast %cst_40 : f32 to vector<8x128xf32>
    %128 = arith.addf %127, %126 : vector<8x128xf32>
    %129 = arith.divf %127, %128 : vector<8x128xf32>
    %130 = arith.mulf %121, %102 : vector<8x128xf32>
    %131 = arith.mulf %115, %123 : vector<8x128xf32>
    %132 = arith.addf %130, %131 : vector<8x128xf32>
    %133 = math.tanh %132 : vector<8x128xf32>
    %134 = arith.mulf %129, %133 : vector<8x128xf32>
    %c4_i32 = arith.constant 4 : i32
    %c0_41 = arith.constant 0 : index
    %c0_42 = arith.constant 0 : index
    %135 = vector.load %arg11[%c0_41, %c0_42] : memref<8x128xf32, #tpu.memory_space<vmem>>, vector<8x128xf32>
    tpu.vector_store %arg11[%c0_41, %c0_42], %134 {strides = array<i32>} : memref<8x128xf32, #tpu.memory_space<vmem>>, vector<8x128xf32>,
    %c0_43 = arith.constant 0 : index
    %c0_44 = arith.constant 0 : index
    %136 = vector.load %arg12[%c0_43, %c0_44] : memref<8x128xf32, #tpu.memory_space<vmem>>, vector<8x128xf32>
    tpu.vector_store %arg12[%c0_43, %c0_44], %132 {strides = array<i32>} : memref<8x128xf32, #tpu.memory_space<vmem>>, vector<8x128xf32>,
    %c1_i32_45 = arith.constant 1 : i32
    %137 = arith.cmpi eq, %arg0, %c1_i32_45 : i32
    %138 = arith.extui %137 : i1 to i32
    %c0_i32_46 = arith.constant 0 : i32
    %139 = arith.cmpi ne, %138, %c0_i32_46 : i32
    scf.if %139 {
      %c3 = arith.constant 3 : index
      %c0_47 = arith.constant 0 : index
      %c0_48 = arith.constant 0 : index
      %140 = vector.load %arg1[%c3, %c0_47, %c0_48] : memref<4x8x128xf32, #tpu.memory_space<vmem>>, vector<1x8x128xf32>
      %141 = vector.shape_cast %140 : vector<1x8x128xf32> to vector<8x128xf32>
      %c0_49 = arith.constant 0 : index
      %c0_50 = arith.constant 0 : index
      %142 = vector.load %arg5[%c0_49, %c0_50] : memref<128x512xf32, #tpu.memory_space<vmem>>, vector<128x512xf32>
      %cst_51 = arith.constant dense<0.000000e+00> : vector<8x512xf32>
      %143 = tpu.matmul %141, %142, %cst_51 {dimension_numbers = #tpu.dot_dimension_numbers<[1], [0], [0], [1], [0, 0, 1, 1], [], []>} : vector<8x128xf32>, vector<128x512xf32>, vector<8x512xf32> -> vector<8x512xf32>
      %c0_52 = arith.constant 0 : index
      %c0_53 = arith.constant 0 : index
      %144 = vector.load %arg6[%c0_52, %c0_53] : memref<1x512xf32, #tpu.memory_space<vmem>>, vector<1x512xf32>
      %145 = vector.broadcast %144 : vector<1x512xf32> to vector<8x512xf32>
      %146 = arith.addf %143, %145 : vector<8x512xf32>
      %cst_54 = arith.constant 0.000000e+00 : f32
      %147 = vector.broadcast %cst_54 : f32 to vector<8x128xf32>
      %148 = vector.extract_strided_slice %146 {offsets = [0, 0], sizes = [8, 128], strides = [1, 1]} : vector<8x512xf32> to vector<8x128xf32>
      %149 = arith.negf %148 : vector<8x128xf32>
      %150 = math.exp %149 : vector<8x128xf32>
      %cst_55 = arith.constant 1.000000e+00 : f32
      %151 = vector.broadcast %cst_55 : f32 to vector<8x128xf32>
      %152 = arith.addf %151, %150 : vector<8x128xf32>
      %153 = arith.divf %151, %152 : vector<8x128xf32>
      %154 = vector.extract_strided_slice %146 {offsets = [0, 128], sizes = [8, 128], strides = [1, 1]} : vector<8x512xf32> to vector<8x128xf32>
      %155 = arith.negf %154 : vector<8x128xf32>
      %156 = math.exp %155 : vector<8x128xf32>
      %cst_56 = arith.constant 1.000000e+00 : f32
      %157 = vector.broadcast %cst_56 : f32 to vector<8x128xf32>
      %158 = arith.addf %157, %156 : vector<8x128xf32>
      %159 = arith.divf %157, %158 : vector<8x128xf32>
      %160 = vector.extract_strided_slice %146 {offsets = [0, 256], sizes = [8, 128], strides = [1, 1]} : vector<8x512xf32> to vector<8x128xf32>
      %161 = math.tanh %160 : vector<8x128xf32>
      %162 = vector.extract_strided_slice %146 {offsets = [0, 384], sizes = [8, 128], strides = [1, 1]} : vector<8x512xf32> to vector<8x128xf32>
      %163 = arith.negf %162 : vector<8x128xf32>
      %164 = math.exp %163 : vector<8x128xf32>
      %cst_57 = arith.constant 1.000000e+00 : f32
      %165 = vector.broadcast %cst_57 : f32 to vector<8x128xf32>
      %166 = arith.addf %165, %164 : vector<8x128xf32>
      %167 = arith.divf %165, %166 : vector<8x128xf32>
      %168 = arith.mulf %159, %147 : vector<8x128xf32>
      %169 = arith.mulf %153, %161 : vector<8x128xf32>
      %170 = arith.addf %168, %169 : vector<8x128xf32>
      %171 = math.tanh %170 : vector<8x128xf32>
      %172 = arith.mulf %167, %171 : vector<8x128xf32>
      %c0_58 = arith.constant 0 : index
      %c0_59 = arith.constant 0 : index
      %173 = vector.load %arg11[%c0_58, %c0_59] : memref<8x128xf32, #tpu.memory_space<vmem>>, vector<8x128xf32>
      %174 = tpu.concatenate %173, %172 in 1 : vector<8x128xf32>, vector<8x128xf32> -> vector<8x256xf32>
      %c0_60 = arith.constant 0 : index
      %c0_61 = arith.constant 0 : index
      %175 = vector.load %arg7[%c0_60, %c0_61] : memref<256x128xf32, #tpu.memory_space<vmem>>, vector<256x128xf32>
      %cst_62 = arith.constant dense<0.000000e+00> : vector<8x128xf32>
      %176 = tpu.matmul %174, %175, %cst_62 {dimension_numbers = #tpu.dot_dimension_numbers<[1], [0], [0], [1], [0, 0, 1, 1], [], []>} : vector<8x256xf32>, vector<256x128xf32>, vector<8x128xf32> -> vector<8x128xf32>
      %c0_63 = arith.constant 0 : index
      %c0_64 = arith.constant 0 : index
      %177 = vector.load %arg8[%c0_63, %c0_64] : memref<1x128xf32, #tpu.memory_space<vmem>>, vector<1x128xf32>
      %178 = vector.broadcast %177 : vector<1x128xf32> to vector<8x128xf32>
      %179 = arith.addf %176, %178 : vector<8x128xf32>
      %c0_65 = arith.constant 0 : index
      %c0_66 = arith.constant 0 : index
      %180 = vector.load %arg9[%c0_65, %c0_66] : memref<8x128xf32, #tpu.memory_space<vmem>>, vector<8x128xf32>
      tpu.vector_store %arg9[%c0_65, %c0_66], %179 {strides = array<i32>} : memref<8x128xf32, #tpu.memory_space<vmem>>, vector<8x128xf32>,
    } else {
    }
    return
  }
  func.func @transform_0(%arg0: i32) -> (i32, i32, i32) {
    %c0_i32 = arith.constant 0 : i32
    %c0_i32_0 = arith.constant 0 : i32
    %c0_i32_1 = arith.constant 0 : i32
    return %arg0, %c0_i32, %c0_i32_0 : i32, i32, i32
  }
  func.func @transform_1(%arg0: i32) -> (i32, i32) {
    %c0_i32 = arith.constant 0 : i32
    %c0_i32_0 = arith.constant 0 : i32
    %c0_i32_1 = arith.constant 0 : i32
    return %c0_i32, %c0_i32_0 : i32, i32
  }
  func.func @transform_2(%arg0: i32) -> (i32, i32) {
    %c0_i32 = arith.constant 0 : i32
    %c0_i32_0 = arith.constant 0 : i32
    %c0_i32_1 = arith.constant 0 : i32
    return %c0_i32, %c0_i32_0 : i32, i32
  }
  func.func @transform_3(%arg0: i32) -> (i32, i32) {
    %c0_i32 = arith.constant 0 : i32
    %c0_i32_0 = arith.constant 0 : i32
    %c0_i32_1 = arith.constant 0 : i32
    return %c0_i32, %c0_i32_0 : i32, i32
  }
  func.func @transform_4(%arg0: i32) -> (i32, i32) {
    %c0_i32 = arith.constant 0 : i32
    %c0_i32_0 = arith.constant 0 : i32
    %c0_i32_1 = arith.constant 0 : i32
    return %c0_i32, %c0_i32_0 : i32, i32
  }
  func.func @transform_5(%arg0: i32) -> (i32, i32) {
    %c0_i32 = arith.constant 0 : i32
    %c0_i32_0 = arith.constant 0 : i32
    %c0_i32_1 = arith.constant 0 : i32
    return %c0_i32, %c0_i32_0 : i32, i32
  }
  func.func @transform_6(%arg0: i32) -> (i32, i32) {
    %c0_i32 = arith.constant 0 : i32
    %c0_i32_0 = arith.constant 0 : i32
    %c0_i32_1 = arith.constant 0 : i32
    return %c0_i32, %c0_i32_0 : i32, i32
  }
  func.func @transform_7(%arg0: i32) -> (i32, i32) {
    %c0_i32 = arith.constant 0 : i32
    %c0_i32_0 = arith.constant 0 : i32
    %c0_i32_1 = arith.constant 0 : i32
    return %c0_i32, %c0_i32_0 : i32, i32
  }
  func.func @transform_8(%arg0: i32) -> (i32, i32) {
    %c0_i32 = arith.constant 0 : i32
    %c0_i32_0 = arith.constant 0 : i32
    %c0_i32_1 = arith.constant 0 : i32
    return %c0_i32, %c0_i32_0 : i32, i32
  }
}

</mosaic_0001>

<llo_original>
// kernel: tpu_custom_call.1
$region0: #{tpu_custom_call.1}
  #allocation0 [shape = 'u32[]', space=smem, size = 0x4, offset = 0x4, fixed_abs, tag = 'smem constant byte address 0x4 - core index']
  #allocation1 [shape = 'u32[72,128]{1,0:T(1,128)}', space=vmem, size = 0x9000, scoped, tag = 'internal scratch']
  #allocation2 [shape = 'f32[4,8,512]{2,1,0:T(8,128)}', space=vmem, size = 0x10000, scoped, tag = 'scratch operand']
  #allocation3 [shape = 'f32[8,128]{1,0:T(8,128)}', space=vmem, size = 0x1000, scoped, tag = 'scratch operand']
  #allocation4 [shape = 'f32[8,128]{1,0:T(8,128)}', space=vmem, size = 0x1000, scoped, tag = 'scratch operand']
  %s0 = inlined_call_operand.hbm [shape: f32[8,8,128], index: 0, kind: input, shape index: {}]
  %s1 = inlined_call_operand.hbm [shape: f32[128,512], index: 1, kind: input, shape index: {}]
  %s2 = inlined_call_operand.hbm [shape: f32[128,512], index: 2, kind: input, shape index: {}]
  %s3 = inlined_call_operand.hbm [shape: f32[1,512], index: 3, kind: input, shape index: {}]
  %s4 = inlined_call_operand.hbm [shape: f32[128,512], index: 4, kind: input, shape index: {}]
  %s5 = inlined_call_operand.vmem [shape: f32[1,512], index: 5, kind: input, shape index: {}]
  %s6 = inlined_call_operand.hbm [shape: f32[256,128], index: 6, kind: input, shape index: {}]
  %s7 = inlined_call_operand.vmem [shape: f32[1,128], index: 7, kind: input, shape index: {}]
  %s8 = inlined_call_operand.hbm [shape: f32[8,128], index: 8, kind: output, shape index: {}]
  %s9 = sld [smem:[#allocation0]]
  $region97: #{tpu_custom_call.1} parent=0
    _
  %s11 = ssub.s32 1, %s9
  %s12 = scalar_select 0, %s11, %s9
  $region1: #{tpu_custom_call.1} parent=0
    #allocation5 [shape = 'u8[32768]{0}', space=vmem, size = 0x8000, scoped, tag = 'input window, operand 0']
    #allocation6 [shape = 's32[2]{0}', space=sflag, size = 0x8, scoped, tag = 'scoped memory for tpu_custom_call.1']
    #allocation7 [shape = 's32[2]{0}', space=sflag, size = 0x8, scoped, tag = 'scoped memory for tpu_custom_call.1']
    #allocation8 [shape = 'u8[262144]{0}', space=vmem, size = 0x40000, scoped, tag = 'input window, operand 1, single buffered']
    #allocation9 [shape = 's32[1]{0}', space=sflag, size = 0x4, scoped, tag = 'scoped memory for tpu_custom_call.1']
    #allocation10 [shape = 'u8[262144]{0}', space=vmem, size = 0x40000, scoped, tag = 'input window, operand 2, single buffered']
    #allocation11 [shape = 'u8[2048]{0}', space=vmem, size = 0x800, scoped, tag = 'input window, operand 3, single buffered']
    #allocation12 [shape = 's32[1]{0}', space=sflag, size = 0x4, scoped, tag = 'scoped memory for tpu_custom_call.1']
    #allocation13 [shape = 'u8[262144]{0}', space=vmem, size = 0x40000, scoped, tag = 'input window, operand 4, single buffered']
    #allocation14 [shape = 'u8[131072]{0}', space=vmem, size = 0x20000, scoped, tag = 'input window, operand 6, single buffered']
    #allocation15 [shape = 's32[1]{0}', space=sflag, size = 0x4, scoped, tag = 'scoped memory for tpu_custom_call.1']
    #allocation16 [shape = 'u8[4096]{0}', space=vmem, size = 0x1000, scoped, tag = 'output window, operand 0, single buffered']
    %13 = vsyncpa [#allocation6], 0
    %s14 = scalar_lea.sflag [#allocation6], 1
    %15 = vsyncpa %s14, 0
    %16 = vsyncpa [#allocation9], 0
    %17 = vsyncpa [#allocation12], 0
    %18 = vsyncpa [#allocation15], 0
    %19 = vsyncpa [#allocation7], 0
    loop: start=0, step=1, limit=4
    $region2: #{tpu_custom_call.1} parent=1 // loop_pre_header
      _
    $region3: #{tpu_custom_call.1} parent=1 // loop_header
      %s21 = sphi 0, %s25
      %p22 = scmp.ge.s32.totalorder %s21, 4
      %s31 = sphi 0, %s33
      %s34 = sphi 0, %s31
      %s35 = sphi 0, %s34
      %s51 = sphi 0, %s35
      %s55 = sphi 0, %s55
      %s57 = sphi 0, %s55
      %s58 = sphi 0, %s57
      %s72 = sphi 0, %s58
      %s76 = sphi 0, %s76
      %s78 = sphi 0, %s76
      %s79 = sphi 0, %s78
      %s93 = sphi 0, %s79
      %s97 = sphi 0, %s97
      %s99 = sphi 0, %s97
      %s100 = sphi 0, %s99
      %s114 = sphi 0, %s100
      %s118 = sphi 0, %s118
      %s120 = sphi 0, %s118
      %s121 = sphi 0, %s120
      %s135 = sphi 0, %s121
      %s139 = sphi 0, %s139
      %s141 = sphi 0, %s139
      %s142 = sphi 0, %s141
      %s156 = sphi 0, %s142
      %s160 = sphi 0, %s160
      %s162 = sphi 0, %s160
      %s163 = sphi 0, %s162
      %s177 = sphi 0, %s163
      %s181 = sphi 0, %s181
      %s183 = sphi 0, %s181
      %s184 = sphi 0, %s183
      %s198 = sphi 0, %s184
      %s202 = sphi 0, %s202
      %s204 = sphi 0, %s202
      %s205 = sphi 0, %s204
      %s219 = sphi 0, %s205
    $region4: #{tpu_custom_call.1} parent=1 // loop_header_branch
      %24 = sbr.rel (%p22) target = $region8
    $region5: #{tpu_custom_call.1} parent=1 // loop_body
      %s26 = ssub.s32 %s21, 1
      %s27 = ssub.s32 %s21, 2
      %s28 = sadd.s32 %s21, 1
      %s29 = ssub.s32 %s21, %s28
      %p30 = scmp.eq.s32.totalorder %s29, 0
      %s32 = sadd.s32 %s31, 1
      %s33 = scalar_select %p30, %s31, %s32
      %p36 = pneg %p30
      %p37 = scmp.eq.s32.totalorder %s21, 1
      %p38 = por %p36, %p37
      %p39 = scmp.ne.s32.totalorder %s31, %s34
      %p40 = scmp.eq.s32.totalorder %s21, 0
      %p41 = por %p39, %p40
      %p42 = scmp.ne.s32.totalorder %s31, %s34
      %p43 = scmp.eq.s32.totalorder %s26, 1
      %p44 = por %p42, %p43
      %p45 = scmp.ne.s32.totalorder %s34, %s35
      %p46 = scmp.eq.s32.totalorder %s26, 0
      %p47 = por %p45, %p46
      %p48 = scmp.ne.s32.totalorder %s34, %s35
      %p49 = scmp.eq.s32.totalorder %s27, 1
      %p50 = por %p48, %p49
      %p52 = scmp.ne.s32.totalorder %s35, %s51
      %p53 = scmp.eq.s32.totalorder %s27, 0
      %p54 = por %p52, %p53
      %s56 = sadd.s32 %s55, 1
      %p59 = scmp.eq.s32.totalorder %s21, 1
      %p60 = scmp.ne.s32.totalorder %s55, %s57
      %p61 = scmp.eq.s32.totalorder %s21, 0
      %p62 = por %p60, %p61
      %p63 = scmp.ne.s32.totalorder %s55, %s57
      %p64 = scmp.eq.s32.totalorder %s26, 1
      %p65 = por %p63, %p64
      %p66 = scmp.ne.s32.totalorder %s57, %s58
      %p67 = scmp.eq.s32.totalorder %s26, 0
      %p68 = por %p66, %p67
      %p69 = scmp.ne.s32.totalorder %s57, %s58
      %p70 = scmp.eq.s32.totalorder %s27, 1
      %p71 = por %p69, %p70
      %p73 = scmp.ne.s32.totalorder %s58, %s72
      %p74 = scmp.eq.s32.totalorder %s27, 0
      %p75 = por %p73, %p74
      %s77 = sadd.s32 %s76, 1
      %p80 = scmp.eq.s32.totalorder %s21, 1
      %p81 = scmp.ne.s32.totalorder %s76, %s78
      %p82 = scmp.eq.s32.totalorder %s21, 0
      %p83 = por %p81, %p82
      %p84 = scmp.ne.s32.totalorder %s76, %s78
      %p85 = scmp.eq.s32.totalorder %s26, 1
      %p86 = por %p84, %p85
      %p87 = scmp.ne.s32.totalorder %s78, %s79
      %p88 = scmp.eq.s32.totalorder %s26, 0
      %p89 = por %p87, %p88
      %p90 = scmp.ne.s32.totalorder %s78, %s79
      %p91 = scmp.eq.s32.totalorder %s27, 1
      %p92 = por %p90, %p91
      %p94 = scmp.ne.s32.totalorder %s79, %s93
      %p95 = scmp.eq.s32.totalorder %s27, 0
      %p96 = por %p94, %p95
      %s98 = sadd.s32 %s97, 1
      %p101 = scmp.eq.s32.totalorder %s21, 1
      %p102 = scmp.ne.s32.totalorder %s97, %s99
      %p103 = scmp.eq.s32.totalorder %s21, 0
      %p104 = por %p102, %p103
      %p105 = scmp.ne.s32.totalorder %s97, %s99
      %p106 = scmp.eq.s32.totalorder %s26, 1
      %p107 = por %p105, %p106
      %p108 = scmp.ne.s32.totalorder %s99, %s100
      %p109 = scmp.eq.s32.totalorder %s26, 0
      %p110 = por %p108, %p109
      %p111 = scmp.ne.s32.totalorder %s99, %s100
      %p112 = scmp.eq.s32.totalorder %s27, 1
      %p113 = por %p111, %p112
      %p115 = scmp.ne.s32.totalorder %s100, %s114
      %p116 = scmp.eq.s32.totalorder %s27, 0
      %p117 = por %p115, %p116
      %s119 = sadd.s32 %s118, 1
      %p122 = scmp.eq.s32.totalorder %s21, 1
      %p123 = scmp.ne.s32.totalorder %s118, %s120
      %p124 = scmp.eq.s32.totalorder %s21, 0
      %p125 = por %p123, %p124
      %p126 = scmp.ne.s32.totalorder %s118, %s120
      %p127 = scmp.eq.s32.totalorder %s26, 1
      %p128 = por %p126, %p127
      %p129 = scmp.ne.s32.totalorder %s120, %s121
      %p130 = scmp.eq.s32.totalorder %s26, 0
      %p131 = por %p129, %p130
      %p132 = scmp.ne.s32.totalorder %s120, %s121
      %p133 = scmp.eq.s32.totalorder %s27, 1
      %p134 = por %p132, %p133
      %p136 = scmp.ne.s32.totalorder %s121, %s135
      %p137 = scmp.eq.s32.totalorder %s27, 0
      %p138 = por %p136, %p137
      %s140 = sadd.s32 %s139, 1
      %p143 = scmp.eq.s32.totalorder %s21, 1
      %p144 = scmp.ne.s32.totalorder %s139, %s141
      %p145 = scmp.eq.s32.totalorder %s21, 0
      %p146 = por %p144, %p145
      %p147 = scmp.ne.s32.totalorder %s139, %s141
      %p148 = scmp.eq.s32.totalorder %s26, 1
      %p149 = por %p147, %p148
      %p150 = scmp.ne.s32.totalorder %s141, %s142
      %p151 = scmp.eq.s32.totalorder %s26, 0
      %p152 = por %p150, %p151
      %p153 = scmp.ne.s32.totalorder %s141, %s142
      %p154 = scmp.eq.s32.totalorder %s27, 1
      %p155 = por %p153, %p154
      %p157 = scmp.ne.s32.totalorder %s142, %s156
      %p158 = scmp.eq.s32.totalorder %s27, 0
      %p159 = por %p157, %p158
      %s161 = sadd.s32 %s160, 1
      %p164 = scmp.eq.s32.totalorder %s21, 1
      %p165 = scmp.ne.s32.totalorder %s160, %s162
      %p166 = scmp.eq.s32.totalorder %s21, 0
      %p167 = por %p165, %p166
      %p168 = scmp.ne.s32.totalorder %s160, %s162
      %p169 = scmp.eq.s32.totalorder %s26, 1
      %p170 = por %p168, %p169
      %p171 = scmp.ne.s32.totalorder %s162, %s163
      %p172 = scmp.eq.s32.totalorder %s26, 0
      %p173 = por %p171, %p172
      %p174 = scmp.ne.s32.totalorder %s162, %s163
      %p175 = scmp.eq.s32.totalorder %s27, 1
      %p176 = por %p174, %p175
      %p178 = scmp.ne.s32.totalorder %s163, %s177
      %p179 = scmp.eq.s32.totalorder %s27, 0
      %p180 = por %p178, %p179
      %s182 = sadd.s32 %s181, 1
      %p185 = scmp.eq.s32.totalorder %s21, 1
      %p186 = scmp.ne.s32.totalorder %s181, %s183
      %p187 = scmp.eq.s32.totalorder %s21, 0
      %p188 = por %p186, %p187
      %p189 = scmp.ne.s32.totalorder %s181, %s183
      %p190 = scmp.eq.s32.totalorder %s26, 1
      %p191 = por %p189, %p190
      %p192 = scmp.ne.s32.totalorder %s183, %s184
      %p193 = scmp.eq.s32.totalorder %s26, 0
      %p194 = por %p192, %p193
      %p195 = scmp.ne.s32.totalorder %s183, %s184
      %p196 = scmp.eq.s32.totalorder %s27, 1
      %p197 = por %p195, %p196
      %p199 = scmp.ne.s32.totalorder %s184, %s198
      %p200 = scmp.eq.s32.totalorder %s27, 0
      %p201 = por %p199, %p200
      %s203 = sadd.s32 %s202, 1
      %p206 = scmp.eq.s32.totalorder %s21, 1
      %p207 = scmp.ne.s32.totalorder %s202, %s204
      %p208 = scmp.eq.s32.totalorder %s21, 0
      %p209 = por %p207, %p208
      %p210 = scmp.ne.s32.totalorder %s202, %s204
      %p211 = scmp.eq.s32.totalorder %s26, 1
      %p212 = por %p210, %p211
      %p213 = scmp.ne.s32.totalorder %s204, %s205
      %p214 = scmp.eq.s32.totalorder %s26, 0
      %p215 = por %p213, %p214
      %p216 = scmp.ne.s32.totalorder %s204, %s205
      %p217 = scmp.eq.s32.totalorder %s27, 1
      %p218 = por %p216, %p217
      %p220 = scmp.ne.s32.totalorder %s205, %s219
      %p221 = scmp.eq.s32.totalorder %s27, 0
      %p222 = por %p220, %p221
      %p223 = scmp.le.s32.totalorder 1, %s21
      %p224 = scmp.lt.s32.totalorder %s21, 3
      %p225 = pnand %p223, %p224
      %p226 = pneg %p225
      // Predicated region
      $region9: #{tpu_custom_call.1} parent=5 // pred_check
        _
      $region10: #{tpu_custom_call.1} parent=5 // pred_check_branch
        %228 = sbr.rel (%p225) target = $region12
      $region11: #{tpu_custom_call.1} parent=5 // pred_region
        %s229 = ssub.s32 %s21, 1
        // Predicated region
        $region13: #{tpu_custom_call.1} parent=11 // pred_check
          %p230 = pneg %p68
        $region14: #{tpu_custom_call.1} parent=11 // pred_check_branch
          %232 = sbr.rel (%p230) target = $region16
        $region15: #{tpu_custom_call.1} parent=11 // pred_region
          %234 = vsyncadd [#allocation9], 0
          %s235 = sshll.u32 %s1, 4
          %s236 = int_to_ptr.hbm [resolvable:$true] %s235
          %s237 = sshll.u32 [#allocation8], 4
          %s238 = int_to_ptr.vmem [resolvable:$true] %s237
          %243 = dma.hbm_to_vmem [thread:$0]  %s236, 8192, %s238, [#allocation9], 512, 512, 32
        $region16: #{tpu_custom_call.1} parent=11 // pred_fallthru
          _
        // Predicated region
        $region17: #{tpu_custom_call.1} parent=11 // pred_check
          %p244 = pneg %p89
        $region18: #{tpu_custom_call.1} parent=11 // pred_check_branch
          %246 = sbr.rel (%p244) target = $region20
        $region19: #{tpu_custom_call.1} parent=11 // pred_region
          %248 = vsyncadd [#allocation9], 0
          %s249 = sshll.u32 %s2, 4
          %s250 = int_to_ptr.hbm [resolvable:$true] %s249
          %s251 = sshll.u32 [#allocation10], 4
          %s252 = int_to_ptr.vmem [resolvable:$true] %s251
          %257 = dma.hbm_to_vmem [thread:$0]  %s250, 8192, %s252, [#allocation9], 512, 512, 32
        $region20: #{tpu_custom_call.1} parent=11 // pred_fallthru
          _
        // Predicated region
        $region21: #{tpu_custom_call.1} parent=11 // pred_check
          %p258 = pneg %p110
        $region22: #{tpu_custom_call.1} parent=11 // pred_check_branch
          %260 = sbr.rel (%p258) target = $region24
        $region23: #{tpu_custom_call.1} parent=11 // pred_region
          %262 = vsyncadd [#allocation12], 0
          %s264 = sshll.u32 %s3, 4
          %s265 = int_to_ptr.hbm [resolvable:$true] %s264
          %s266 = sshll.u32 [#allocation11], 4
          %s267 = int_to_ptr.vmem [resolvable:$true] %s266
          %269 = dma.hbm_to_vmem [thread:$0]  %s265, 64, %s267, [#allocation12]
        $region24: #{tpu_custom_call.1} parent=11 // pred_fallthru
          _
        // Predicated region
        $region25: #{tpu_custom_call.1} parent=11 // pred_check
          %p270 = pneg %p131
        $region26: #{tpu_custom_call.1} parent=11 // pred_check_branch
          %272 = sbr.rel (%p270) target = $region28
        $region27: #{tpu_custom_call.1} parent=11 // pred_region
          %274 = vsyncadd [#allocation12], 0
          %s275 = sshll.u32 %s4, 4
          %s276 = int_to_ptr.hbm [resolvable:$true] %s275
          %s277 = sshll.u32 [#allocation13], 4
          %s278 = int_to_ptr.vmem [resolvable:$true] %s277
          %283 = dma.hbm_to_vmem [thread:$0]  %s276, 8192, %s278, [#allocation12], 512, 512, 32
        $region28: #{tpu_custom_call.1} parent=11 // pred_fallthru
          _
        // Predicated region
        $region29: #{tpu_custom_call.1} parent=11 // pred_check
          %p284 = pneg %p152
        $region30: #{tpu_custom_call.1} parent=11 // pred_check_branch
          %286 = sbr.rel (%p284) target = $region32
        $region31: #{tpu_custom_call.1} parent=11 // pred_region
          _
        $region32: #{tpu_custom_call.1} parent=11 // pred_fallthru
          _
        // Predicated region
        $region33: #{tpu_custom_call.1} parent=11 // pred_check
          %p287 = pneg %p173
        $region34: #{tpu_custom_call.1} parent=11 // pred_check_branch
          %289 = sbr.rel (%p287) target = $region36
        $region35: #{tpu_custom_call.1} parent=11 // pred_region
          %291 = vsyncadd [#allocation15], 0
          %s292 = sshll.u32 %s6, 4
          %s293 = int_to_ptr.hbm [resolvable:$true] %s292
          %s294 = sshll.u32 [#allocation14], 4
          %s295 = int_to_ptr.vmem [resolvable:$true] %s294
          %300 = dma.hbm_to_vmem [thread:$0]  %s293, 4096, %s295, [#allocation15], 128, 128, 8
        $region36: #{tpu_custom_call.1} parent=11 // pred_fallthru
          _
        // Predicated region
        $region37: #{tpu_custom_call.1} parent=11 // pred_check
          %p301 = pneg %p194
        $region38: #{tpu_custom_call.1} parent=11 // pred_check_branch
          %303 = sbr.rel (%p301) target = $region40
        $region39: #{tpu_custom_call.1} parent=11 // pred_region
          _
        $region40: #{tpu_custom_call.1} parent=11 // pred_fallthru
          _
      $region12: #{tpu_custom_call.1} parent=5 // pred_fallthru
        _
      %p304 = scmp.lt.s32.totalorder %s21, 2
      // Predicated region
      $region41: #{tpu_custom_call.1} parent=5 // pred_check
        %p305 = pneg %p304
      $region42: #{tpu_custom_call.1} parent=5 // pred_check_branch
        %307 = sbr.rel (%p305) target = $region44
      $region43: #{tpu_custom_call.1} parent=5 // pred_region
        // Predicated region
        $region45: #{tpu_custom_call.1} parent=43 // pred_check
          %p308 = pneg %p41
        $region46: #{tpu_custom_call.1} parent=43 // pred_check_branch
          %310 = sbr.rel (%p308) target = $region48
        $region47: #{tpu_custom_call.1} parent=43 // pred_region
          %s311 = sand.u32 %s31, 1
          %s312 = scalar_lea.sflag [#allocation6], %s311
          %s313 = sand.u32 %s31, 1
          %s314 = smul.addr %s313, 32
          %s315 = scalar_lea.vmem [#allocation5], %s314
          %s316 = smul.u32 4, %s21
          %318 = vsyncadd %s312, 0
          %s319 = smul.addr %s316, 8
          %s320 = scalar_lea.hbm %s0, %s319
          %s321 = sshll.u32 %s320, 4
          %s322 = int_to_ptr.hbm [resolvable:$true] %s321
          %s323 = sshll.u32 %s315, 4
          %s324 = int_to_ptr.vmem [resolvable:$true] %s323
          %329 = dma.hbm_to_vmem [thread:$0]  %s322, 512, %s324, %s312, 128, 128, 8
        $region48: #{tpu_custom_call.1} parent=43 // pred_fallthru
          _
      $region44: #{tpu_custom_call.1} parent=5 // pred_fallthru
        _
      %p330 = scmp.le.s32.totalorder 1, %s21
      %p331 = scmp.lt.s32.totalorder %s21, 3
      %p332 = pnand %p330, %p331
      %p333 = pneg %p332
      // Predicated region
      $region49: #{tpu_custom_call.1} parent=5 // pred_check
        _
      $region50: #{tpu_custom_call.1} parent=5 // pred_check_branch
        %335 = sbr.rel (%p332) target = $region52
      $region51: #{tpu_custom_call.1} parent=5 // pred_region
        %s336 = ssub.s32 %s21, 1
        %s337 = sand.u32 %s34, 1
        %s338 = scalar_lea.sflag [#allocation6], %s337
        %s339 = sand.u32 %s34, 1
        %s340 = smul.addr %s339, 32
        %s341 = scalar_lea.vmem [#allocation5], %s340
        // Predicated region
        $region53: #{tpu_custom_call.1} parent=51 // pred_check
          %p342 = pneg %p47
        $region54: #{tpu_custom_call.1} parent=51 // pred_check_branch
          %344 = sbr.rel (%p342) target = $region56
        $region55: #{tpu_custom_call.1} parent=51 // pred_region
          %346 = dma.done %s338, 512
        $region56: #{tpu_custom_call.1} parent=51 // pred_fallthru
          _
        // Predicated region
        $region57: #{tpu_custom_call.1} parent=51 // pred_check
          %p347 = pneg %p68
        $region58: #{tpu_custom_call.1} parent=51 // pred_check_branch
          %349 = sbr.rel (%p347) target = $region60
        $region59: #{tpu_custom_call.1} parent=51 // pred_region
          %351 = dma.done [#allocation9], 8192
        $region60: #{tpu_custom_call.1} parent=51 // pred_fallthru
          _
        // Predicated region
        $region61: #{tpu_custom_call.1} parent=51 // pred_check
          %p352 = pneg %p89
        $region62: #{tpu_custom_call.1} parent=51 // pred_check_branch
          %354 = sbr.rel (%p352) target = $region64
        $region63: #{tpu_custom_call.1} parent=51 // pred_region
          %356 = dma.done [#allocation9], 8192
        $region64: #{tpu_custom_call.1} parent=51 // pred_fallthru
          _
        // Predicated region
        $region65: #{tpu_custom_call.1} parent=51 // pred_check
          %p357 = pneg %p110
        $region66: #{tpu_custom_call.1} parent=51 // pred_check_branch
          %359 = sbr.rel (%p357) target = $region68
        $region67: #{tpu_custom_call.1} parent=51 // pred_region
          %361 = dma.done [#allocation12], 64
        $region68: #{tpu_custom_call.1} parent=51 // pred_fallthru
          _
        // Predicated region
        $region69: #{tpu_custom_call.1} parent=51 // pred_check
          %p362 = pneg %p131
        $region70: #{tpu_custom_call.1} parent=51 // pred_check_branch
          %364 = sbr.rel (%p362) target = $region72
        $region71: #{tpu_custom_call.1} parent=51 // pred_region
          %366 = dma.done [#allocation12], 8192
        $region72: #{tpu_custom_call.1} parent=51 // pred_fallthru
          _
        // Predicated region
        $region73: #{tpu_custom_call.1} parent=51 // pred_check
          %p367 = pneg %p173
        $region74: #{tpu_custom_call.1} parent=51 // pred_check_branch
          %369 = sbr.rel (%p367) target = $region76
        $region75: #{tpu_custom_call.1} parent=51 // pred_region
          %371 = dma.done [#allocation15], 4096
        $region76: #{tpu_custom_call.1} parent=51 // pred_fallthru
          _
        %s372 = sand.u32 %s34, 1
        %s373 = scalar_lea.sflag [#allocation6], %s372
        %s374 = sand.u32 %s34, 1
        %s375 = smul.addr %s374, 32
        %s376 = scalar_lea.vmem [#allocation5], %s375
        %p377 = pneg %p47
        %p378 = pneg %p44
        %p379 = pneg %p68
        %p380 = pneg %p65
        %p381 = pneg %p89
        %p382 = pneg %p86
        %p383 = pneg %p110
        %p384 = pneg %p107
        %p385 = pneg %p131
        %p386 = pneg %p128
        %p387 = pneg %p152
        %p388 = pneg %p149
        %p389 = pneg %p173
        %p390 = pneg %p170
        %p391 = pneg %p194
        %p392 = pneg %p191
        %p393 = pneg %p215
        %p394 = pneg %p212
        %s395 = smul.u32 4, %s26
        %p396 = scmp.eq.s32.totalorder %s26, 0
        // Predicated region
        $region77: #{tpu_custom_call.1} parent=51 // pred_check
          %p397 = pneg %p396
        $region78: #{tpu_custom_call.1} parent=51 // pred_check_branch
          %399 = sbr.rel (%p397) target = $region80
        $region79: #{tpu_custom_call.1} parent=51 // pred_region
          %400 = vst [vmem:[#allocation3] sm:$0xff] 0.0
          %401 = vst [vmem:[#allocation4] sm:$0xff] 0.0
        $region80: #{tpu_custom_call.1} parent=51 // pred_fallthru
          _
        %v402 = vld [vmem:[%s341] sm:$0xff]
        %v403 = vld [vmem:[%s341 + $0x8] sm:$0xff]
        %v404 = vld [vmem:[%s341 + $0x10] sm:$0xff]
        %v405 = vld [vmem:[%s341 + $0x18] sm:$0xff]
        %v406 = vld [vmem:[#allocation8] sm:$0xff]
        %v407 = vld [vmem:[#allocation8 + $0x8] sm:$0xff]
        %v408 = vld [vmem:[#allocation8 + $0x10] sm:$0xff]
        %v409 = vld [vmem:[#allocation8 + $0x18] sm:$0xff]
        %v410 = vld [vmem:[#allocation8 + $0x20] sm:$0xff]
        %v411 = vld [vmem:[#allocation8 + $0x28] sm:$0xff]
        %v412 = vld [vmem:[#allocation8 + $0x30] sm:$0xff]
        %v413 = vld [vmem:[#allocation8 + $0x38] sm:$0xff]
        %v414 = vld [vmem:[#allocation8 + $0x40] sm:$0xff]
        %v415 = vld [vmem:[#allocation8 + $0x48] sm:$0xff]
        %v416 = vld [vmem:[#allocation8 + $0x50] sm:$0xff]
        %v417 = vld [vmem:[#allocation8 + $0x58] sm:$0xff]
        %v418 = vld [vmem:[#allocation8 + $0x60] sm:$0xff]
        %v419 = vld [vmem:[#allocation8 + $0x68] sm:$0xff]
        %v420 = vld [vmem:[#allocation8 + $0x70] sm:$0xff]
        %v421 = vld [vmem:[#allocation8 + $0x78] sm:$0xff]
        %v422 = vld [vmem:[#allocation8 + $0x80] sm:$0xff]
        %v423 = vld [vmem:[#allocation8 + $0x88] sm:$0xff]
        %v424 = vld [vmem:[#allocation8 + $0x90] sm:$0xff]
        %v425 = vld [vmem:[#allocation8 + $0x98] sm:$0xff]
        %v426 = vld [vmem:[#allocation8 + $0xa0] sm:$0xff]
        %v427 = vld [vmem:[#allocation8 + $0xa8] sm:$0xff]
        %v428 = vld [vmem:[#allocation8 + $0xb0] sm:$0xff]
        %v429 = vld [vmem:[#allocation8 + $0xb8] sm:$0xff]
        %v430 = vld [vmem:[#allocation8 + $0xc0] sm:$0xff]
        %v431 = vld [vmem:[#allocation8 + $0xc8] sm:$0xff]
        %v432 = vld [vmem:[#allocation8 + $0xd0] sm:$0xff]
        %v433 = vld [vmem:[#allocation8 + $0xd8] sm:$0xff]
        %v434 = vld [vmem:[#allocation8 + $0xe0] sm:$0xff]
        %v435 = vld [vmem:[#allocation8 + $0xe8] sm:$0xff]
        %v436 = vld [vmem:[#allocation8 + $0xf0] sm:$0xff]
        %v437 = vld [vmem:[#allocation8 + $0xf8] sm:$0xff]
        %v438 = vld [vmem:[#allocation8 + $0x100] sm:$0xff]
        %v439 = vld [vmem:[#allocation8 + $0x108] sm:$0xff]
        %v440 = vld [vmem:[#allocation8 + $0x110] sm:$0xff]
        %v441 = vld [vmem:[#allocation8 + $0x118] sm:$0xff]
        %v442 = vld [vmem:[#allocation8 + $0x120] sm:$0xff]
        %v443 = vld [vmem:[#allocation8 + $0x128] sm:$0xff]
        %v444 = vld [vmem:[#allocation8 + $0x130] sm:$0xff]
        %v445 = vld [vmem:[#allocation8 + $0x138] sm:$0xff]
        %v446 = vld [vmem:[#allocation8 + $0x140] sm:$0xff]
        %v447 = vld [vmem:[#allocation8 + $0x148] sm:$0xff]
        %v448 = vld [vmem:[#allocation8 + $0x150] sm:$0xff]
        %v449 = vld [vmem:[#allocation8 + $0x158] sm:$0xff]
        %v450 = vld [vmem:[#allocation8 + $0x160] sm:$0xff]
        %v451 = vld [vmem:[#allocation8 + $0x168] sm:$0xff]
        %v452 = vld [vmem:[#allocation8 + $0x170] sm:$0xff]
        %v453 = vld [vmem:[#allocation8 + $0x178] sm:$0xff]
        %v454 = vld [vmem:[#allocation8 + $0x180] sm:$0xff]
        %v455 = vld [vmem:[#allocation8 + $0x188] sm:$0xff]
        %v456 = vld [vmem:[#allocation8 + $0x190] sm:$0xff]
        %v457 = vld [vmem:[#allocation8 + $0x198] sm:$0xff]
        %v458 = vld [vmem:[#allocation8 + $0x1a0] sm:$0xff]
        %v459 = vld [vmem:[#allocation8 + $0x1a8] sm:$0xff]
        %v460 = vld [vmem:[#allocation8 + $0x1b0] sm:$0xff]
        %v461 = vld [vmem:[#allocation8 + $0x1b8] sm:$0xff]
        %v462 = vld [vmem:[#allocation8 + $0x1c0] sm:$0xff]
        %v463 = vld [vmem:[#allocation8 + $0x1c8] sm:$0xff]
        %v464 = vld [vmem:[#allocation8 + $0x1d0] sm:$0xff]
        %v465 = vld [vmem:[#allocation8 + $0x1d8] sm:$0xff]
        %v466 = vld [vmem:[#allocation8 + $0x1e0] sm:$0xff]
        %v467 = vld [vmem:[#allocation8 + $0x1e8] sm:$0xff]
        %v468 = vld [vmem:[#allocation8 + $0x1f0] sm:$0xff]
        %v469 = vld [vmem:[#allocation8 + $0x1f8] sm:$0xff]
        %v470 = vld [vmem:[#allocation11] sm:$0xf]
        %v472 = vperm.slane %v470, 0
        %v473 = vperm.slane %v470, 1
        %v474 = vperm.slane %v470, 2
        %v475 = vperm.slane %v470, 3
        %480 = vmatpush.msra.mxu0 %v466
        %481 = vmatpush.msra.mxu0 %v462
        %482 = vmatpush.msra.mxu0 %v458
        %483 = vmatpush.msra.mxu0 %v454
        %484 = vmatpush.msra.mxu0 %v450
        %485 = vmatpush.msra.mxu0 %v446
        %486 = vmatpush.msra.mxu0 %v442
        %487 = vmatpush.msra.mxu0 %v438
        %488 = vmatpush.msra.mxu0 %v434
        %489 = vmatpush.msra.mxu0 %v430
        %490 = vmatpush.msra.mxu0 %v426
        %491 = vmatpush.msra.mxu0 %v422
        %492 = vmatpush.msra.mxu0 %v418
        %493 = vmatpush.msra.mxu0 %v414
        %494 = vmatpush.msra.mxu0 %v410
        %495 = vmatpush.msra.mxu0 %v406
        %496 = vmatmul.f32.gmra.mxu0 %v402
        %v497 = vpop.f32.mrf.mxu0
        %v498 = vadd.f32 %v472, %v497
        %499 = vmatmul.f32.gmra.mxu0 %v403
        %v500 = vpop.f32.mrf.mxu0
        %v501 = vadd.f32 %v472, %v500
        %502 = vmatmul.f32.gmra.mxu0 %v404
        %v503 = vpop.f32.mrf.mxu0
        %v504 = vadd.f32 %v472, %v503
        %505 = vmatmul.f32.gmra.mxu0 %v405
        %v506 = vpop.f32.mrf.mxu0
        %v507 = vadd.f32 %v472, %v506
        %508 = vdwg.mxu0
        %509 = vmatpush.msra.mxu0 %v467
        %510 = vmatpush.msra.mxu0 %v463
        %511 = vmatpush.msra.mxu0 %v459
        %512 = vmatpush.msra.mxu0 %v455
        %513 = vmatpush.msra.mxu0 %v451
        %514 = vmatpush.msra.mxu0 %v447
        %515 = vmatpush.msra.mxu0 %v443
        %516 = vmatpush.msra.mxu0 %v439
        %517 = vmatpush.msra.mxu0 %v435
        %518 = vmatpush.msra.mxu0 %v431
        %519 = vmatpush.msra.mxu0 %v427
        %520 = vmatpush.msra.mxu0 %v423
        %521 = vmatpush.msra.mxu0 %v419
        %522 = vmatpush.msra.mxu0 %v415
        %523 = vmatpush.msra.mxu0 %v411
        %524 = vmatpush.msra.mxu0 %v407
        %525 = vmatmul.f32.gmra.mxu0 %v402
        %v526 = vpop.f32.mrf.mxu0
        %v527 = vadd.f32 %v473, %v526
        %528 = vmatmul.f32.gmra.mxu0 %v403
        %v529 = vpop.f32.mrf.mxu0
        %v530 = vadd.f32 %v473, %v529
        %531 = vmatmul.f32.gmra.mxu0 %v404
        %v532 = vpop.f32.mrf.mxu0
        %v533 = vadd.f32 %v473, %v532
        %534 = vmatmul.f32.gmra.mxu0 %v405
        %v535 = vpop.f32.mrf.mxu0
        %v536 = vadd.f32 %v473, %v535
        %537 = vdwg.mxu0
        %538 = vmatpush.msra.mxu0 %v468
        %539 = vmatpush.msra.mxu0 %v464
        %540 = vmatpush.msra.mxu0 %v460
        %541 = vmatpush.msra.mxu0 %v456
        %542 = vmatpush.msra.mxu0 %v452
        %543 = vmatpush.msra.mxu0 %v448
        %544 = vmatpush.msra.mxu0 %v444
        %545 = vmatpush.msra.mxu0 %v440
        %546 = vmatpush.msra.mxu0 %v436
        %547 = vmatpush.msra.mxu0 %v432
        %548 = vmatpush.msra.mxu0 %v428
        %549 = vmatpush.msra.mxu0 %v424
        %550 = vmatpush.msra.mxu0 %v420
        %551 = vmatpush.msra.mxu0 %v416
        %552 = vmatpush.msra.mxu0 %v412
        %553 = vmatpush.msra.mxu0 %v408
        %554 = vmatmul.f32.gmra.mxu0 %v402
        %v555 = vpop.f32.mrf.mxu0
        %v556 = vadd.f32 %v474, %v555
        %557 = vmatmul.f32.gmra.mxu0 %v403
        %v558 = vpop.f32.mrf.mxu0
        %v559 = vadd.f32 %v474, %v558
        %560 = vmatmul.f32.gmra.mxu0 %v404
        %v561 = vpop.f32.mrf.mxu0
        %v562 = vadd.f32 %v474, %v561
        %563 = vmatmul.f32.gmra.mxu0 %v405
        %v564 = vpop.f32.mrf.mxu0
        %v565 = vadd.f32 %v474, %v564
        %566 = vdwg.mxu0
        %567 = vmatpush.msra.mxu0 %v469
        %568 = vmatpush.msra.mxu0 %v465
        %569 = vmatpush.msra.mxu0 %v461
        %570 = vmatpush.msra.mxu0 %v457
        %571 = vmatpush.msra.mxu0 %v453
        %572 = vmatpush.msra.mxu0 %v449
        %573 = vmatpush.msra.mxu0 %v445
        %574 = vmatpush.msra.mxu0 %v441
        %575 = vmatpush.msra.mxu0 %v437
        %576 = vmatpush.msra.mxu0 %v433
        %577 = vmatpush.msra.mxu0 %v429
        %578 = vmatpush.msra.mxu0 %v425
        %579 = vmatpush.msra.mxu0 %v421
        %580 = vmatpush.msra.mxu0 %v417
        %581 = vmatpush.msra.mxu0 %v413
        %582 = vmatpush.msra.mxu0 %v409
        %583 = vmatmul.f32.gmra.mxu0 %v402
        %v584 = vpop.f32.mrf.mxu0
        %v585 = vadd.f32 %v475, %v584
        %586 = vmatmul.f32.gmra.mxu0 %v403
        %v587 = vpop.f32.mrf.mxu0
        %v588 = vadd.f32 %v475, %v587
        %589 = vmatmul.f32.gmra.mxu0 %v404
        %v590 = vpop.f32.mrf.mxu0
        %v591 = vadd.f32 %v475, %v590
        %592 = vmatmul.f32.gmra.mxu0 %v405
        %v593 = vpop.f32.mrf.mxu0
        %v594 = vadd.f32 %v475, %v593
        %595 = vdwg.mxu0
        %596 = vst [vmem:[#allocation2] sm:$0xff] %v498
        %597 = vst [vmem:[#allocation2 + $0x8] sm:$0xff] %v527
        %598 = vst [vmem:[#allocation2 + $0x10] sm:$0xff] %v556
        %599 = vst [vmem:[#allocation2 + $0x18] sm:$0xff] %v585
        %600 = vst [vmem:[#allocation2 + $0x20] sm:$0xff] %v501
        %601 = vst [vmem:[#allocation2 + $0x28] sm:$0xff] %v530
        %602 = vst [vmem:[#allocation2 + $0x30] sm:$0xff] %v559
        %603 = vst [vmem:[#allocation2 + $0x38] sm:$0xff] %v588
        %604 = vst [vmem:[#allocation2 + $0x40] sm:$0xff] %v504
        %605 = vst [vmem:[#allocation2 + $0x48] sm:$0xff] %v533
        %606 = vst [vmem:[#allocation2 + $0x50] sm:$0xff] %v562
        %607 = vst [vmem:[#allocation2 + $0x58] sm:$0xff] %v591
        %608 = vst [vmem:[#allocation2 + $0x60] sm:$0xff] %v507
        %609 = vst [vmem:[#allocation2 + $0x68] sm:$0xff] %v536
        %610 = vst [vmem:[#allocation2 + $0x70] sm:$0xff] %v565
        %611 = vst [vmem:[#allocation2 + $0x78] sm:$0xff] %v594
        %v612 = vld [vmem:[#allocation10] sm:$0xff]
        %v613 = vld [vmem:[#allocation10 + $0x8] sm:$0xff]
        %v614 = vld [vmem:[#allocation10 + $0x10] sm:$0xff]
        %v615 = vld [vmem:[#allocation10 + $0x18] sm:$0xff]
        %v616 = vld [vmem:[#allocation10 + $0x20] sm:$0xff]
        %v617 = vld [vmem:[#allocation10 + $0x28] sm:$0xff]
        %v618 = vld [vmem:[#allocation10 + $0x30] sm:$0xff]
        %v619 = vld [vmem:[#allocation10 + $0x38] sm:$0xff]
        %v620 = vld [vmem:[#allocation10 + $0x40] sm:$0xff]
        %v621 = vld [vmem:[#allocation10 + $0x48] sm:$0xff]
        %v622 = vld [vmem:[#allocation10 + $0x50] sm:$0xff]
        %v623 = vld [vmem:[#allocation10 + $0x58] sm:$0xff]
        %v624 = vld [vmem:[#allocation10 + $0x60] sm:$0xff]
        %v625 = vld [vmem:[#allocation10 + $0x68] sm:$0xff]
        %v626 = vld [vmem:[#allocation10 + $0x70] sm:$0xff]
        %v627 = vld [vmem:[#allocation10 + $0x78] sm:$0xff]
        %v628 = vld [vmem:[#allocation10 + $0x80] sm:$0xff]
        %v629 = vld [vmem:[#allocation10 + $0x88] sm:$0xff]
        %v630 = vld [vmem:[#allocation10 + $0x90] sm:$0xff]
        %v631 = vld [vmem:[#allocation10 + $0x98] sm:$0xff]
        %v632 = vld [vmem:[#allocation10 + $0xa0] sm:$0xff]
        %v633 = vld [vmem:[#allocation10 + $0xa8] sm:$0xff]
        %v634 = vld [vmem:[#allocation10 + $0xb0] sm:$0xff]
        %v635 = vld [vmem:[#allocation10 + $0xb8] sm:$0xff]
        %v636 = vld [vmem:[#allocation10 + $0xc0] sm:$0xff]
        %v637 = vld [vmem:[#allocation10 + $0xc8] sm:$0xff]
        %v638 = vld [vmem:[#allocation10 + $0xd0] sm:$0xff]
        %v639 = vld [vmem:[#allocation10 + $0xd8] sm:$0xff]
        %v640 = vld [vmem:[#allocation10 + $0xe0] sm:$0xff]
        %v641 = vld [vmem:[#allocation10 + $0xe8] sm:$0xff]
        %v642 = vld [vmem:[#allocation10 + $0xf0] sm:$0xff]
        %v643 = vld [vmem:[#allocation10 + $0xf8] sm:$0xff]
        %v644 = vld [vmem:[#allocation10 + $0x100] sm:$0xff]
        %v645 = vld [vmem:[#allocation10 + $0x108] sm:$0xff]
        %v646 = vld [vmem:[#allocation10 + $0x110] sm:$0xff]
        %v647 = vld [vmem:[#allocation10 + $0x118] sm:$0xff]
        %v648 = vld [vmem:[#allocation10 + $0x120] sm:$0xff]
        %v649 = vld [vmem:[#allocation10 + $0x128] sm:$0xff]
        %v650 = vld [vmem:[#allocation10 + $0x130] sm:$0xff]
        %v651 = vld [vmem:[#allocation10 + $0x138] sm:$0xff]
        %v652 = vld [vmem:[#allocation10 + $0x140] sm:$0xff]
        %v653 = vld [vmem:[#allocation10 + $0x148] sm:$0xff]
        %v654 = vld [vmem:[#allocation10 + $0x150] sm:$0xff]
        %v655 = vld [vmem:[#allocation10 + $0x158] sm:$0xff]
        %v656 = vld [vmem:[#allocation10 + $0x160] sm:$0xff]
        %v657 = vld [vmem:[#allocation10 + $0x168] sm:$0xff]
        %v658 = vld [vmem:[#allocation10 + $0x170] sm:$0xff]
        %v659 = vld [vmem:[#allocation10 + $0x178] sm:$0xff]
        %v660 = vld [vmem:[#allocation10 + $0x180] sm:$0xff]
        %v661 = vld [vmem:[#allocation10 + $0x188] sm:$0xff]
        %v662 = vld [vmem:[#allocation10 + $0x190] sm:$0xff]
        %v663 = vld [vmem:[#allocation10 + $0x198] sm:$0xff]
        %v664 = vld [vmem:[#allocation10 + $0x1a0] sm:$0xff]
        %v665 = vld [vmem:[#allocation10 + $0x1a8] sm:$0xff]
        %v666 = vld [vmem:[#allocation10 + $0x1b0] sm:$0xff]
        %v667 = vld [vmem:[#allocation10 + $0x1b8] sm:$0xff]
        %v668 = vld [vmem:[#allocation10 + $0x1c0] sm:$0xff]
        %v669 = vld [vmem:[#allocation10 + $0x1c8] sm:$0xff]
        %v670 = vld [vmem:[#allocation10 + $0x1d0] sm:$0xff]
        %v671 = vld [vmem:[#allocation10 + $0x1d8] sm:$0xff]
        %v672 = vld [vmem:[#allocation10 + $0x1e0] sm:$0xff]
        %v673 = vld [vmem:[#allocation10 + $0x1e8] sm:$0xff]
        %v674 = vld [vmem:[#allocation10 + $0x1f0] sm:$0xff]
        %v675 = vld [vmem:[#allocation10 + $0x1f8] sm:$0xff]
        %v676 = vld [vmem:[#allocation3] sm:$0xff]
        %v677 = vld [vmem:[#allocation4] sm:$0xff]
        %v678 = vld [vmem:[#allocation2] sm:$0xff]
        %v679 = vld [vmem:[#allocation2 + $0x8] sm:$0xff]
        %v680 = vld [vmem:[#allocation2 + $0x10] sm:$0xff]
        %v681 = vld [vmem:[#allocation2 + $0x18] sm:$0xff]
        %682 = vmatpush.msra.mxu0 %v672
        %683 = vmatpush.msra.mxu0 %v668
        %684 = vmatpush.msra.mxu0 %v664
        %685 = vmatpush.msra.mxu0 %v660
        %686 = vmatpush.msra.mxu0 %v656
        %687 = vmatpush.msra.mxu0 %v652
        %688 = vmatpush.msra.mxu0 %v648
        %689 = vmatpush.msra.mxu0 %v644
        %690 = vmatpush.msra.mxu0 %v640
        %691 = vmatpush.msra.mxu0 %v636
        %692 = vmatpush.msra.mxu0 %v632
        %693 = vmatpush.msra.mxu0 %v628
        %694 = vmatpush.msra.mxu0 %v624
        %695 = vmatpush.msra.mxu0 %v620
        %696 = vmatpush.msra.mxu0 %v616
        %697 = vmatpush.msra.mxu0 %v612
        %698 = vmatmul.f32.gmra.mxu0 %v676
        %v699 = vpop.f32.mrf.mxu0
        %v700 = vadd.f32 0.0, %v699
        %701 = vdwg.mxu0
        %702 = vmatpush.msra.mxu0 %v673
        %703 = vmatpush.msra.mxu0 %v669
        %704 = vmatpush.msra.mxu0 %v665
        %705 = vmatpush.msra.mxu0 %v661
        %706 = vmatpush.msra.mxu0 %v657
        %707 = vmatpush.msra.mxu0 %v653
        %708 = vmatpush.msra.mxu0 %v649
        %709 = vmatpush.msra.mxu0 %v645
        %710 = vmatpush.msra.mxu0 %v641
        %711 = vmatpush.msra.mxu0 %v637
        %712 = vmatpush.msra.mxu0 %v633
        %713 = vmatpush.msra.mxu0 %v629
        %714 = vmatpush.msra.mxu0 %v625
        %715 = vmatpush.msra.mxu0 %v621
        %716 = vmatpush.msra.mxu0 %v617
        %717 = vmatpush.msra.mxu0 %v613
        %718 = vmatmul.f32.gmra.mxu0 %v676
        %v719 = vpop.f32.mrf.mxu0
        %v720 = vadd.f32 0.0, %v719
        %721 = vdwg.mxu0
        %722 = vmatpush.msra.mxu0 %v674
        %723 = vmatpush.msra.mxu0 %v670
        %724 = vmatpush.msra.mxu0 %v666
        %725 = vmatpush.msra.mxu0 %v662
        %726 = vmatpush.msra.mxu0 %v658
        %727 = vmatpush.msra.mxu0 %v654
        %728 = vmatpush.msra.mxu0 %v650
        %729 = vmatpush.msra.mxu0 %v646
        %730 = vmatpush.msra.mxu0 %v642
        %731 = vmatpush.msra.mxu0 %v638
        %732 = vmatpush.msra.mxu0 %v634
        %733 = vmatpush.msra.mxu0 %v630
        %734 = vmatpush.msra.mxu0 %v626
        %735 = vmatpush.msra.mxu0 %v622
        %736 = vmatpush.msra.mxu0 %v618
        %737 = vmatpush.msra.mxu0 %v614
        %738 = vmatmul.f32.gmra.mxu0 %v676
        %v739 = vpop.f32.mrf.mxu0
        %v740 = vadd.f32 0.0, %v739
        %741 = vdwg.mxu0
        %742 = vmatpush.msra.mxu0 %v675
        %743 = vmatpush.msra.mxu0 %v671
        %744 = vmatpush.msra.mxu0 %v667
        %745 = vmatpush.msra.mxu0 %v663
        %746 = vmatpush.msra.mxu0 %v659
        %747 = vmatpush.msra.mxu0 %v655
        %748 = vmatpush.msra.mxu0 %v651
        %749 = vmatpush.msra.mxu0 %v647
        %750 = vmatpush.msra.mxu0 %v643
        %751 = vmatpush.msra.mxu0 %v639
        %752 = vmatpush.msra.mxu0 %v635
        %753 = vmatpush.msra.mxu0 %v631
        %754 = vmatpush.msra.mxu0 %v627
        %755 = vmatpush.msra.mxu0 %v623
        %756 = vmatpush.msra.mxu0 %v619
        %757 = vmatpush.msra.mxu0 %v615
        %758 = vmatmul.f32.gmra.mxu0 %v676
        %v759 = vpop.f32.mrf.mxu0
        %v760 = vadd.f32 0.0, %v759
        %761 = vdwg.mxu0
        %v762 = vadd.f32 %v678, %v700
        %v763 = vadd.f32 %v679, %v720
        %v764 = vadd.f32 %v680, %v740
        %v765 = vadd.f32 %v681, %v760
        %v766 = vxor.u32 %v762, 2147483648
        %v767 = vmul.f32 %v766, 1.442695
        %v768 = vpow.pop %v767
        %v769 = vadd.f32 %v768, 1.0
        %v770 = vrcp.pop %v769
        %v771 = vmul.f32 %v769, %v770
        %v772 = vsub.f32 1.0, %v771
        %v773 = vmul.f32 %v770, %v772
        %v774 = vadd.f32 %v770, %v773
        %vm775 = vweird.f32 %v769
        %vm776 = vweird.f32 %v770
        %vm777 = vmor %vm775, %vm776
        %v778 = vsel %vm777, %v770, %v774
        %v779 = vand.u32 2147483647, %v769
        %vm780 = vcmp.eq.f32.partialorder %v779, 8.507059e+37
        %v781 = vand.u32 %v769, 2147483648
        %v782 = vor.u32 1.1754944e-38, %v781
        %v783 = vsel %vm780, %v782, %v778
        %v784 = vmul.f32 1.0, %v783
        %v785 = vxor.u32 %v763, 2147483648
        %v786 = vmul.f32 %v785, 1.442695
        %v787 = vpow.pop %v786
        %v788 = vadd.f32 %v787, 1.0
        %v789 = vrcp.pop %v788
        %v790 = vmul.f32 %v788, %v789
        %v791 = vsub.f32 1.0, %v790
        %v792 = vmul.f32 %v789, %v791
        %v793 = vadd.f32 %v789, %v792
        %vm794 = vweird.f32 %v788
        %vm795 = vweird.f32 %v789
        %vm796 = vmor %vm794, %vm795
        %v797 = vsel %vm796, %v789, %v793
        %v798 = vand.u32 2147483647, %v788
        %vm799 = vcmp.eq.f32.partialorder %v798, 8.507059e+37
        %v800 = vand.u32 %v788, 2147483648
        %v801 = vor.u32 1.1754944e-38, %v800
        %v802 = vsel %vm799, %v801, %v797
        %v803 = vmul.f32 1.0, %v802
        %v804 = vtanh.pop %v764
        %v805 = vxor.u32 %v765, 2147483648
        %v806 = vmul.f32 %v805, 1.442695
        %v807 = vpow.pop %v806
        %v808 = vadd.f32 %v807, 1.0
        %v809 = vrcp.pop %v808
        %v810 = vmul.f32 %v808, %v809
        %v811 = vsub.f32 1.0, %v810
        %v812 = vmul.f32 %v809, %v811
        %v813 = vadd.f32 %v809, %v812
        %vm814 = vweird.f32 %v808
        %vm815 = vweird.f32 %v809
        %vm816 = vmor %vm814, %vm815
        %v817 = vsel %vm816, %v809, %v813
        %v818 = vand.u32 2147483647, %v808
        %vm819 = vcmp.eq.f32.partialorder %v818, 8.507059e+37
        %v820 = vand.u32 %v808, 2147483648
        %v821 = vor.u32 1.1754944e-38, %v820
        %v822 = vsel %vm819, %v821, %v817
        %v823 = vmul.f32 1.0, %v822
        %v824 = vmul.f32 %v803, %v677
        %v825 = vmul.f32 %v784, %v804
        %v826 = vadd.f32 %v824, %v825
        %v827 = vtanh.pop %v826
        %v828 = vmul.f32 %v823, %v827
        %s829 = scalar_lea.vmem [#allocation2], 32
        %v830 = vld [vmem:[%s829] sm:$0xff]
        %v831 = vld [vmem:[%s829 + $0x8] sm:$0xff]
        %v832 = vld [vmem:[%s829 + $0x10] sm:$0xff]
        %v833 = vld [vmem:[%s829 + $0x18] sm:$0xff]
        %834 = vmatpush.msra.mxu0 %v672
        %835 = vmatpush.msra.mxu0 %v668
        %836 = vmatpush.msra.mxu0 %v664
        %837 = vmatpush.msra.mxu0 %v660
        %838 = vmatpush.msra.mxu0 %v656
        %839 = vmatpush.msra.mxu0 %v652
        %840 = vmatpush.msra.mxu0 %v648
        %841 = vmatpush.msra.mxu0 %v644
        %842 = vmatpush.msra.mxu0 %v640
        %843 = vmatpush.msra.mxu0 %v636
        %844 = vmatpush.msra.mxu0 %v632
        %845 = vmatpush.msra.mxu0 %v628
        %846 = vmatpush.msra.mxu0 %v624
        %847 = vmatpush.msra.mxu0 %v620
        %848 = vmatpush.msra.mxu0 %v616
        %849 = vmatpush.msra.mxu0 %v612
        %850 = vmatmul.f32.gmra.mxu0 %v828
        %v851 = vpop.f32.mrf.mxu0
        %v852 = vadd.f32 0.0, %v851
        %853 = vdwg.mxu0
        %854 = vmatpush.msra.mxu0 %v673
        %855 = vmatpush.msra.mxu0 %v669
        %856 = vmatpush.msra.mxu0 %v665
        %857 = vmatpush.msra.mxu0 %v661
        %858 = vmatpush.msra.mxu0 %v657
        %859 = vmatpush.msra.mxu0 %v653
        %860 = vmatpush.msra.mxu0 %v649
        %861 = vmatpush.msra.mxu0 %v645
        %862 = vmatpush.msra.mxu0 %v641
        %863 = vmatpush.msra.mxu0 %v637
        %864 = vmatpush.msra.mxu0 %v633
        %865 = vmatpush.msra.mxu0 %v629
        %866 = vmatpush.msra.mxu0 %v625
        %867 = vmatpush.msra.mxu0 %v621
        %868 = vmatpush.msra.mxu0 %v617
        %869 = vmatpush.msra.mxu0 %v613
        %870 = vmatmul.f32.gmra.mxu0 %v828
        %v871 = vpop.f32.mrf.mxu0
        %v872 = vadd.f32 0.0, %v871
        %873 = vdwg.mxu0
        %874 = vmatpush.msra.mxu0 %v674
        %875 = vmatpush.msra.mxu0 %v670
        %876 = vmatpush.msra.mxu0 %v666
        %877 = vmatpush.msra.mxu0 %v662
        %878 = vmatpush.msra.mxu0 %v658
        %879 = vmatpush.msra.mxu0 %v654
        %880 = vmatpush.msra.mxu0 %v650
        %881 = vmatpush.msra.mxu0 %v646
        %882 = vmatpush.msra.mxu0 %v642
        %883 = vmatpush.msra.mxu0 %v638
        %884 = vmatpush.msra.mxu0 %v634
        %885 = vmatpush.msra.mxu0 %v630
        %886 = vmatpush.msra.mxu0 %v626
        %887 = vmatpush.msra.mxu0 %v622
        %888 = vmatpush.msra.mxu0 %v618
        %889 = vmatpush.msra.mxu0 %v614
        %890 = vmatmul.f32.gmra.mxu0 %v828
        %v891 = vpop.f32.mrf.mxu0
        %v892 = vadd.f32 0.0, %v891
        %893 = vdwg.mxu0
        %894 = vmatpush.msra.mxu0 %v675
        %895 = vmatpush.msra.mxu0 %v671
        %896 = vmatpush.msra.mxu0 %v667
        %897 = vmatpush.msra.mxu0 %v663
        %898 = vmatpush.msra.mxu0 %v659
        %899 = vmatpush.msra.mxu0 %v655
        %900 = vmatpush.msra.mxu0 %v651
        %901 = vmatpush.msra.mxu0 %v647
        %902 = vmatpush.msra.mxu0 %v643
        %903 = vmatpush.msra.mxu0 %v639
        %904 = vmatpush.msra.mxu0 %v635
        %905 = vmatpush.msra.mxu0 %v631
        %906 = vmatpush.msra.mxu0 %v627
        %907 = vmatpush.msra.mxu0 %v623
        %908 = vmatpush.msra.mxu0 %v619
        %909 = vmatpush.msra.mxu0 %v615
        %910 = vmatmul.f32.gmra.mxu0 %v828
        %v911 = vpop.f32.mrf.mxu0
        %v912 = vadd.f32 0.0, %v911
        %913 = vdwg.mxu0
        %v914 = vadd.f32 %v830, %v852
        %v915 = vadd.f32 %v831, %v872
        %v916 = vadd.f32 %v832, %v892
        %v917 = vadd.f32 %v833, %v912
        %v918 = vxor.u32 %v914, 2147483648
        %v919 = vmul.f32 %v918, 1.442695
        %v920 = vpow.pop %v919
        %v921 = vadd.f32 %v920, 1.0
        %v922 = vrcp.pop %v921
        %v923 = vmul.f32 %v921, %v922
        %v924 = vsub.f32 1.0, %v923
        %v925 = vmul.f32 %v922, %v924
        %v926 = vadd.f32 %v922, %v925
        %vm927 = vweird.f32 %v921
        %vm928 = vweird.f32 %v922
        %vm929 = vmor %vm927, %vm928
        %v930 = vsel %vm929, %v922, %v926
        %v931 = vand.u32 2147483647, %v921
        %vm932 = vcmp.eq.f32.partialorder %v931, 8.507059e+37
        %v933 = vand.u32 %v921, 2147483648
        %v934 = vor.u32 1.1754944e-38, %v933
        %v935 = vsel %vm932, %v934, %v930
        %v936 = vmul.f32 1.0, %v935
        %v937 = vxor.u32 %v915, 2147483648
        %v938 = vmul.f32 %v937, 1.442695
        %v939 = vpow.pop %v938
        %v940 = vadd.f32 %v939, 1.0
        %v941 = vrcp.pop %v940
        %v942 = vmul.f32 %v940, %v941
        %v943 = vsub.f32 1.0, %v942
        %v944 = vmul.f32 %v941, %v943
        %v945 = vadd.f32 %v941, %v944
        %vm946 = vweird.f32 %v940
        %vm947 = vweird.f32 %v941
        %vm948 = vmor %vm946, %vm947
        %v949 = vsel %vm948, %v941, %v945
        %v950 = vand.u32 2147483647, %v940
        %vm951 = vcmp.eq.f32.partialorder %v950, 8.507059e+37
        %v952 = vand.u32 %v940, 2147483648
        %v953 = vor.u32 1.1754944e-38, %v952
        %v954 = vsel %vm951, %v953, %v949
        %v955 = vmul.f32 1.0, %v954
        %v956 = vtanh.pop %v916
        %v957 = vxor.u32 %v917, 2147483648
        %v958 = vmul.f32 %v957, 1.442695
        %v959 = vpow.pop %v958
        %v960 = vadd.f32 %v959, 1.0
        %v961 = vrcp.pop %v960
        %v962 = vmul.f32 %v960, %v961
        %v963 = vsub.f32 1.0, %v962
        %v964 = vmul.f32 %v961, %v963
        %v965 = vadd.f32 %v961, %v964
        %vm966 = vweird.f32 %v960
        %vm967 = vweird.f32 %v961
        %vm968 = vmor %vm966, %vm967
        %v969 = vsel %vm968, %v961, %v965
        %v970 = vand.u32 2147483647, %v960
        %vm971 = vcmp.eq.f32.partialorder %v970, 8.507059e+37
        %v972 = vand.u32 %v960, 2147483648
        %v973 = vor.u32 1.1754944e-38, %v972
        %v974 = vsel %vm971, %v973, %v969
        %v975 = vmul.f32 1.0, %v974
        %v976 = vmul.f32 %v955, %v826
        %v977 = vmul.f32 %v936, %v956
        %v978 = vadd.f32 %v976, %v977
        %v979 = vtanh.pop %v978
        %v980 = vmul.f32 %v975, %v979
        %s981 = scalar_lea.vmem [#allocation2], 64
        %v982 = vld [vmem:[%s981] sm:$0xff]
        %v983 = vld [vmem:[%s981 + $0x8] sm:$0xff]
        %v984 = vld [vmem:[%s981 + $0x10] sm:$0xff]
        %v985 = vld [vmem:[%s981 + $0x18] sm:$0xff]
        %986 = vmatpush.msra.mxu0 %v672
        %987 = vmatpush.msra.mxu0 %v668
        %988 = vmatpush.msra.mxu0 %v664
        %989 = vmatpush.msra.mxu0 %v660
        %990 = vmatpush.msra.mxu0 %v656
        %991 = vmatpush.msra.mxu0 %v652
        %992 = vmatpush.msra.mxu0 %v648
        %993 = vmatpush.msra.mxu0 %v644
        %994 = vmatpush.msra.mxu0 %v640
        %995 = vmatpush.msra.mxu0 %v636
        %996 = vmatpush.msra.mxu0 %v632
        %997 = vmatpush.msra.mxu0 %v628
        %998 = vmatpush.msra.mxu0 %v624
        %999 = vmatpush.msra.mxu0 %v620
        %1000 = vmatpush.msra.mxu0 %v616
        %1001 = vmatpush.msra.mxu0 %v612
        %1002 = vmatmul.f32.gmra.mxu0 %v980
        %v1003 = vpop.f32.mrf.mxu0
        %v1004 = vadd.f32 0.0, %v1003
        %1005 = vdwg.mxu0
        %1006 = vmatpush.msra.mxu0 %v673
        %1007 = vmatpush.msra.mxu0 %v669
        %1008 = vmatpush.msra.mxu0 %v665
        %1009 = vmatpush.msra.mxu0 %v661
        %1010 = vmatpush.msra.mxu0 %v657
        %1011 = vmatpush.msra.mxu0 %v653
        %1012 = vmatpush.msra.mxu0 %v649
        %1013 = vmatpush.msra.mxu0 %v645
        %1014 = vmatpush.msra.mxu0 %v641
        %1015 = vmatpush.msra.mxu0 %v637
        %1016 = vmatpush.msra.mxu0 %v633
        %1017 = vmatpush.msra.mxu0 %v629
        %1018 = vmatpush.msra.mxu0 %v625
        %1019 = vmatpush.msra.mxu0 %v621
        %1020 = vmatpush.msra.mxu0 %v617
        %1021 = vmatpush.msra.mxu0 %v613
        %1022 = vmatmul.f32.gmra.mxu0 %v980
        %v1023 = vpop.f32.mrf.mxu0
        %v1024 = vadd.f32 0.0, %v1023
        %1025 = vdwg.mxu0
        %1026 = vmatpush.msra.mxu0 %v674
        %1027 = vmatpush.msra.mxu0 %v670
        %1028 = vmatpush.msra.mxu0 %v666
        %1029 = vmatpush.msra.mxu0 %v662
        %1030 = vmatpush.msra.mxu0 %v658
        %1031 = vmatpush.msra.mxu0 %v654
        %1032 = vmatpush.msra.mxu0 %v650
        %1033 = vmatpush.msra.mxu0 %v646
        %1034 = vmatpush.msra.mxu0 %v642
        %1035 = vmatpush.msra.mxu0 %v638
        %1036 = vmatpush.msra.mxu0 %v634
        %1037 = vmatpush.msra.mxu0 %v630
        %1038 = vmatpush.msra.mxu0 %v626
        %1039 = vmatpush.msra.mxu0 %v622
        %1040 = vmatpush.msra.mxu0 %v618
        %1041 = vmatpush.msra.mxu0 %v614
        %1042 = vmatmul.f32.gmra.mxu0 %v980
        %v1043 = vpop.f32.mrf.mxu0
        %v1044 = vadd.f32 0.0, %v1043
        %1045 = vdwg.mxu0
        %1046 = vmatpush.msra.mxu0 %v675
        %1047 = vmatpush.msra.mxu0 %v671
        %1048 = vmatpush.msra.mxu0 %v667
        %1049 = vmatpush.msra.mxu0 %v663
        %1050 = vmatpush.msra.mxu0 %v659
        %1051 = vmatpush.msra.mxu0 %v655
        %1052 = vmatpush.msra.mxu0 %v651
        %1053 = vmatpush.msra.mxu0 %v647
        %1054 = vmatpush.msra.mxu0 %v643
        %1055 = vmatpush.msra.mxu0 %v639
        %1056 = vmatpush.msra.mxu0 %v635
        %1057 = vmatpush.msra.mxu0 %v631
        %1058 = vmatpush.msra.mxu0 %v627
        %1059 = vmatpush.msra.mxu0 %v623
        %1060 = vmatpush.msra.mxu0 %v619
        %1061 = vmatpush.msra.mxu0 %v615
        %1062 = vmatmul.f32.gmra.mxu0 %v980
        %v1063 = vpop.f32.mrf.mxu0
        %v1064 = vadd.f32 0.0, %v1063
        %1065 = vdwg.mxu0
        %v1066 = vadd.f32 %v982, %v1004
        %v1067 = vadd.f32 %v983, %v1024
        %v1068 = vadd.f32 %v984, %v1044
        %v1069 = vadd.f32 %v985, %v1064
        %v1070 = vxor.u32 %v1066, 2147483648
        %v1071 = vmul.f32 %v1070, 1.442695
        %v1072 = vpow.pop %v1071
        %v1073 = vadd.f32 %v1072, 1.0
        %v1074 = vrcp.pop %v1073
        %v1075 = vmul.f32 %v1073, %v1074
        %v1076 = vsub.f32 1.0, %v1075
        %v1077 = vmul.f32 %v1074, %v1076
        %v1078 = vadd.f32 %v1074, %v1077
        %vm1079 = vweird.f32 %v1073
        %vm1080 = vweird.f32 %v1074
        %vm1081 = vmor %vm1079, %vm1080
        %v1082 = vsel %vm1081, %v1074, %v1078
        %v1083 = vand.u32 2147483647, %v1073
        %vm1084 = vcmp.eq.f32.partialorder %v1083, 8.507059e+37
        %v1085 = vand.u32 %v1073, 2147483648
        %v1086 = vor.u32 1.1754944e-38, %v1085
        %v1087 = vsel %vm1084, %v1086, %v1082
        %v1088 = vmul.f32 1.0, %v1087
        %v1089 = vxor.u32 %v1067, 2147483648
        %v1090 = vmul.f32 %v1089, 1.442695
        %v1091 = vpow.pop %v1090
        %v1092 = vadd.f32 %v1091, 1.0
        %v1093 = vrcp.pop %v1092
        %v1094 = vmul.f32 %v1092, %v1093
        %v1095 = vsub.f32 1.0, %v1094
        %v1096 = vmul.f32 %v1093, %v1095
        %v1097 = vadd.f32 %v1093, %v1096
        %vm1098 = vweird.f32 %v1092
        %vm1099 = vweird.f32 %v1093
        %vm1100 = vmor %vm1098, %vm1099
        %v1101 = vsel %vm1100, %v1093, %v1097
        %v1102 = vand.u32 2147483647, %v1092
        %vm1103 = vcmp.eq.f32.partialorder %v1102, 8.507059e+37
        %v1104 = vand.u32 %v1092, 2147483648
        %v1105 = vor.u32 1.1754944e-38, %v1104
        %v1106 = vsel %vm1103, %v1105, %v1101
        %v1107 = vmul.f32 1.0, %v1106
        %v1108 = vtanh.pop %v1068
        %v1109 = vxor.u32 %v1069, 2147483648
        %v1110 = vmul.f32 %v1109, 1.442695
        %v1111 = vpow.pop %v1110
        %v1112 = vadd.f32 %v1111, 1.0
        %v1113 = vrcp.pop %v1112
        %v1114 = vmul.f32 %v1112, %v1113
        %v1115 = vsub.f32 1.0, %v1114
        %v1116 = vmul.f32 %v1113, %v1115
        %v1117 = vadd.f32 %v1113, %v1116
        %vm1118 = vweird.f32 %v1112
        %vm1119 = vweird.f32 %v1113
        %vm1120 = vmor %vm1118, %vm1119
        %v1121 = vsel %vm1120, %v1113, %v1117
        %v1122 = vand.u32 2147483647, %v1112
        %vm1123 = vcmp.eq.f32.partialorder %v1122, 8.507059e+37
        %v1124 = vand.u32 %v1112, 2147483648
        %v1125 = vor.u32 1.1754944e-38, %v1124
        %v1126 = vsel %vm1123, %v1125, %v1121
        %v1127 = vmul.f32 1.0, %v1126
        %v1128 = vmul.f32 %v1107, %v978
        %v1129 = vmul.f32 %v1088, %v1108
        %v1130 = vadd.f32 %v1128, %v1129
        %v1131 = vtanh.pop %v1130
        %v1132 = vmul.f32 %v1127, %v1131
        %s1133 = scalar_lea.vmem [#allocation2], 96
        %v1134 = vld [vmem:[%s1133] sm:$0xff]
        %v1135 = vld [vmem:[%s1133 + $0x8] sm:$0xff]
        %v1136 = vld [vmem:[%s1133 + $0x10] sm:$0xff]
        %v1137 = vld [vmem:[%s1133 + $0x18] sm:$0xff]
        %1138 = vmatpush.msra.mxu0 %v672
        %1139 = vmatpush.msra.mxu0 %v668
        %1140 = vmatpush.msra.mxu0 %v664
        %1141 = vmatpush.msra.mxu0 %v660
        %1142 = vmatpush.msra.mxu0 %v656
        %1143 = vmatpush.msra.mxu0 %v652
        %1144 = vmatpush.msra.mxu0 %v648
        %1145 = vmatpush.msra.mxu0 %v644
        %1146 = vmatpush.msra.mxu0 %v640
        %1147 = vmatpush.msra.mxu0 %v636
        %1148 = vmatpush.msra.mxu0 %v632
        %1149 = vmatpush.msra.mxu0 %v628
        %1150 = vmatpush.msra.mxu0 %v624
        %1151 = vmatpush.msra.mxu0 %v620
        %1152 = vmatpush.msra.mxu0 %v616
        %1153 = vmatpush.msra.mxu0 %v612
        %1154 = vmatmul.f32.gmra.mxu0 %v1132
        %v1155 = vpop.f32.mrf.mxu0
        %v1156 = vadd.f32 0.0, %v1155
        %1157 = vdwg.mxu0
        %1158 = vmatpush.msra.mxu0 %v673
        %1159 = vmatpush.msra.mxu0 %v669
        %1160 = vmatpush.msra.mxu0 %v665
        %1161 = vmatpush.msra.mxu0 %v661
        %1162 = vmatpush.msra.mxu0 %v657
        %1163 = vmatpush.msra.mxu0 %v653
        %1164 = vmatpush.msra.mxu0 %v649
        %1165 = vmatpush.msra.mxu0 %v645
        %1166 = vmatpush.msra.mxu0 %v641
        %1167 = vmatpush.msra.mxu0 %v637
        %1168 = vmatpush.msra.mxu0 %v633
        %1169 = vmatpush.msra.mxu0 %v629
        %1170 = vmatpush.msra.mxu0 %v625
        %1171 = vmatpush.msra.mxu0 %v621
        %1172 = vmatpush.msra.mxu0 %v617
        %1173 = vmatpush.msra.mxu0 %v613
        %1174 = vmatmul.f32.gmra.mxu0 %v1132
        %v1175 = vpop.f32.mrf.mxu0
        %v1176 = vadd.f32 0.0, %v1175
        %1177 = vdwg.mxu0
        %1178 = vmatpush.msra.mxu0 %v674
        %1179 = vmatpush.msra.mxu0 %v670
        %1180 = vmatpush.msra.mxu0 %v666
        %1181 = vmatpush.msra.mxu0 %v662
        %1182 = vmatpush.msra.mxu0 %v658
        %1183 = vmatpush.msra.mxu0 %v654
        %1184 = vmatpush.msra.mxu0 %v650
        %1185 = vmatpush.msra.mxu0 %v646
        %1186 = vmatpush.msra.mxu0 %v642
        %1187 = vmatpush.msra.mxu0 %v638
        %1188 = vmatpush.msra.mxu0 %v634
        %1189 = vmatpush.msra.mxu0 %v630
        %1190 = vmatpush.msra.mxu0 %v626
        %1191 = vmatpush.msra.mxu0 %v622
        %1192 = vmatpush.msra.mxu0 %v618
        %1193 = vmatpush.msra.mxu0 %v614
        %1194 = vmatmul.f32.gmra.mxu0 %v1132
        %v1195 = vpop.f32.mrf.mxu0
        %v1196 = vadd.f32 0.0, %v1195
        %1197 = vdwg.mxu0
        %1198 = vmatpush.msra.mxu0 %v675
        %1199 = vmatpush.msra.mxu0 %v671
        %1200 = vmatpush.msra.mxu0 %v667
        %1201 = vmatpush.msra.mxu0 %v663
        %1202 = vmatpush.msra.mxu0 %v659
        %1203 = vmatpush.msra.mxu0 %v655
        %1204 = vmatpush.msra.mxu0 %v651
        %1205 = vmatpush.msra.mxu0 %v647
        %1206 = vmatpush.msra.mxu0 %v643
        %1207 = vmatpush.msra.mxu0 %v639
        %1208 = vmatpush.msra.mxu0 %v635
        %1209 = vmatpush.msra.mxu0 %v631
        %1210 = vmatpush.msra.mxu0 %v627
        %1211 = vmatpush.msra.mxu0 %v623
        %1212 = vmatpush.msra.mxu0 %v619
        %1213 = vmatpush.msra.mxu0 %v615
        %1214 = vmatmul.f32.gmra.mxu0 %v1132
        %v1215 = vpop.f32.mrf.mxu0
        %v1216 = vadd.f32 0.0, %v1215
        %1217 = vdwg.mxu0
        %v1218 = vadd.f32 %v1134, %v1156
        %v1219 = vadd.f32 %v1135, %v1176
        %v1220 = vadd.f32 %v1136, %v1196
        %v1221 = vadd.f32 %v1137, %v1216
        %v1222 = vxor.u32 %v1218, 2147483648
        %v1223 = vmul.f32 %v1222, 1.442695
        %v1224 = vpow.pop %v1223
        %v1225 = vadd.f32 %v1224, 1.0
        %v1226 = vrcp.pop %v1225
        %v1227 = vmul.f32 %v1225, %v1226
        %v1228 = vsub.f32 1.0, %v1227
        %v1229 = vmul.f32 %v1226, %v1228
        %v1230 = vadd.f32 %v1226, %v1229
        %vm1231 = vweird.f32 %v1225
        %vm1232 = vweird.f32 %v1226
        %vm1233 = vmor %vm1231, %vm1232
        %v1234 = vsel %vm1233, %v1226, %v1230
        %v1235 = vand.u32 2147483647, %v1225
        %vm1236 = vcmp.eq.f32.partialorder %v1235, 8.507059e+37
        %v1237 = vand.u32 %v1225, 2147483648
        %v1238 = vor.u32 1.1754944e-38, %v1237
        %v1239 = vsel %vm1236, %v1238, %v1234
        %v1240 = vmul.f32 1.0, %v1239
        %v1241 = vxor.u32 %v1219, 2147483648
        %v1242 = vmul.f32 %v1241, 1.442695
        %v1243 = vpow.pop %v1242
        %v1244 = vadd.f32 %v1243, 1.0
        %v1245 = vrcp.pop %v1244
        %v1246 = vmul.f32 %v1244, %v1245
        %v1247 = vsub.f32 1.0, %v1246
        %v1248 = vmul.f32 %v1245, %v1247
        %v1249 = vadd.f32 %v1245, %v1248
        %vm1250 = vweird.f32 %v1244
        %vm1251 = vweird.f32 %v1245
        %vm1252 = vmor %vm1250, %vm1251
        %v1253 = vsel %vm1252, %v1245, %v1249
        %v1254 = vand.u32 2147483647, %v1244
        %vm1255 = vcmp.eq.f32.partialorder %v1254, 8.507059e+37
        %v1256 = vand.u32 %v1244, 2147483648
        %v1257 = vor.u32 1.1754944e-38, %v1256
        %v1258 = vsel %vm1255, %v1257, %v1253
        %v1259 = vmul.f32 1.0, %v1258
        %v1260 = vtanh.pop %v1220
        %v1261 = vxor.u32 %v1221, 2147483648
        %v1262 = vmul.f32 %v1261, 1.442695
        %v1263 = vpow.pop %v1262
        %v1264 = vadd.f32 %v1263, 1.0
        %v1265 = vrcp.pop %v1264
        %v1266 = vmul.f32 %v1264, %v1265
        %v1267 = vsub.f32 1.0, %v1266
        %v1268 = vmul.f32 %v1265, %v1267
        %v1269 = vadd.f32 %v1265, %v1268
        %vm1270 = vweird.f32 %v1264
        %vm1271 = vweird.f32 %v1265
        %vm1272 = vmor %vm1270, %vm1271
        %v1273 = vsel %vm1272, %v1265, %v1269
        %v1274 = vand.u32 2147483647, %v1264
        %vm1275 = vcmp.eq.f32.partialorder %v1274, 8.507059e+37
        %v1276 = vand.u32 %v1264, 2147483648
        %v1277 = vor.u32 1.1754944e-38, %v1276
        %v1278 = vsel %vm1275, %v1277, %v1273
        %v1279 = vmul.f32 1.0, %v1278
        %v1280 = vmul.f32 %v1259, %v1130
        %v1281 = vmul.f32 %v1240, %v1260
        %v1282 = vadd.f32 %v1280, %v1281
        %v1283 = vtanh.pop %v1282
        %v1284 = vmul.f32 %v1279, %v1283
        %1285 = vst [vmem:[#allocation3] sm:$0xff] %v1284
        %1286 = vst [vmem:[#allocation4] sm:$0xff] %v1282
        %p1287 = scmp.eq.s32.totalorder %s26, 1
        // Predicated region
        $region81: #{tpu_custom_call.1} parent=51 // pred_check
          %p1288 = pneg %p1287
        $region82: #{tpu_custom_call.1} parent=51 // pred_check_branch
          %1290 = sbr.rel (%p1288) target = $region84
        $region83: #{tpu_custom_call.1} parent=51 // pred_region
          %s1291 = scalar_lea.vmem %s341, 24 [#allocation5]
          %v1292 = vld [vmem:[%s1291] sm:$0xff]
          %v1293 = vld [vmem:[#allocation13] sm:$0xff]
          %v1294 = vld [vmem:[#allocation13 + $0x8] sm:$0xff]
          %v1295 = vld [vmem:[#allocation13 + $0x10] sm:$0xff]
          %v1296 = vld [vmem:[#allocation13 + $0x18] sm:$0xff]
          %v1297 = vld [vmem:[#allocation13 + $0x20] sm:$0xff]
          %v1298 = vld [vmem:[#allocation13 + $0x28] sm:$0xff]
          %v1299 = vld [vmem:[#allocation13 + $0x30] sm:$0xff]
          %v1300 = vld [vmem:[#allocation13 + $0x38] sm:$0xff]
          %v1301 = vld [vmem:[#allocation13 + $0x40] sm:$0xff]
          %v1302 = vld [vmem:[#allocation13 + $0x48] sm:$0xff]
          %v1303 = vld [vmem:[#allocation13 + $0x50] sm:$0xff]
          %v1304 = vld [vmem:[#allocation13 + $0x58] sm:$0xff]
          %v1305 = vld [vmem:[#allocation13 + $0x60] sm:$0xff]
          %v1306 = vld [vmem:[#allocation13 + $0x68] sm:$0xff]
          %v1307 = vld [vmem:[#allocation13 + $0x70] sm:$0xff]
          %v1308 = vld [vmem:[#allocation13 + $0x78] sm:$0xff]
          %v1309 = vld [vmem:[#allocation13 + $0x80] sm:$0xff]
          %v1310 = vld [vmem:[#allocation13 + $0x88] sm:$0xff]
          %v1311 = vld [vmem:[#allocation13 + $0x90] sm:$0xff]
          %v1312 = vld [vmem:[#allocation13 + $0x98] sm:$0xff]
          %v1313 = vld [vmem:[#allocation13 + $0xa0] sm:$0xff]
          %v1314 = vld [vmem:[#allocation13 + $0xa8] sm:$0xff]
          %v1315 = vld [vmem:[#allocation13 + $0xb0] sm:$0xff]
          %v1316 = vld [vmem:[#allocation13 + $0xb8] sm:$0xff]
          %v1317 = vld [vmem:[#allocation13 + $0xc0] sm:$0xff]
          %v1318 = vld [vmem:[#allocation13 + $0xc8] sm:$0xff]
          %v1319 = vld [vmem:[#allocation13 + $0xd0] sm:$0xff]
          %v1320 = vld [vmem:[#allocation13 + $0xd8] sm:$0xff]
          %v1321 = vld [vmem:[#allocation13 + $0xe0] sm:$0xff]
          %v1322 = vld [vmem:[#allocation13 + $0xe8] sm:$0xff]
          %v1323 = vld [vmem:[#allocation13 + $0xf0] sm:$0xff]
          %v1324 = vld [vmem:[#allocation13 + $0xf8] sm:$0xff]
          %v1325 = vld [vmem:[#allocation13 + $0x100] sm:$0xff]
          %v1326 = vld [vmem:[#allocation13 + $0x108] sm:$0xff]
          %v1327 = vld [vmem:[#allocation13 + $0x110] sm:$0xff]
          %v1328 = vld [vmem:[#allocation13 + $0x118] sm:$0xff]
          %v1329 = vld [vmem:[#allocation13 + $0x120] sm:$0xff]
          %v1330 = vld [vmem:[#allocation13 + $0x128] sm:$0xff]
          %v1331 = vld [vmem:[#allocation13 + $0x130] sm:$0xff]
          %v1332 = vld [vmem:[#allocation13 + $0x138] sm:$0xff]
          %v1333 = vld [vmem:[#allocation13 + $0x140] sm:$0xff]
          %v1334 = vld [vmem:[#allocation13 + $0x148] sm:$0xff]
          %v1335 = vld [vmem:[#allocation13 + $0x150] sm:$0xff]
          %v1336 = vld [vmem:[#allocation13 + $0x158] sm:$0xff]
          %v1337 = vld [vmem:[#allocation13 + $0x160] sm:$0xff]
          %v1338 = vld [vmem:[#allocation13 + $0x168] sm:$0xff]
          %v1339 = vld [vmem:[#allocation13 + $0x170] sm:$0xff]
          %v1340 = vld [vmem:[#allocation13 + $0x178] sm:$0xff]
          %v1341 = vld [vmem:[#allocation13 + $0x180] sm:$0xff]
          %v1342 = vld [vmem:[#allocation13 + $0x188] sm:$0xff]
          %v1343 = vld [vmem:[#allocation13 + $0x190] sm:$0xff]
          %v1344 = vld [vmem:[#allocation13 + $0x198] sm:$0xff]
          %v1345 = vld [vmem:[#allocation13 + $0x1a0] sm:$0xff]
          %v1346 = vld [vmem:[#allocation13 + $0x1a8] sm:$0xff]
          %v1347 = vld [vmem:[#allocation13 + $0x1b0] sm:$0xff]
          %v1348 = vld [vmem:[#allocation13 + $0x1b8] sm:$0xff]
          %v1349 = vld [vmem:[#allocation13 + $0x1c0] sm:$0xff]
          %v1350 = vld [vmem:[#allocation13 + $0x1c8] sm:$0xff]
          %v1351 = vld [vmem:[#allocation13 + $0x1d0] sm:$0xff]
          %v1352 = vld [vmem:[#allocation13 + $0x1d8] sm:$0xff]
          %v1353 = vld [vmem:[#allocation13 + $0x1e0] sm:$0xff]
          %v1354 = vld [vmem:[#allocation13 + $0x1e8] sm:$0xff]
          %v1355 = vld [vmem:[#allocation13 + $0x1f0] sm:$0xff]
          %v1356 = vld [vmem:[#allocation13 + $0x1f8] sm:$0xff]
          %v1357 = vld [vmem:[%s5] sm:$0xf]
          %v1359 = vperm.slane %v1357, 0
          %v1360 = vperm.slane %v1357, 1
          %v1361 = vperm.slane %v1357, 2
          %v1362 = vperm.slane %v1357, 3
          %1367 = vmatpush.msra.mxu0 %v1353
          %1368 = vmatpush.msra.mxu0 %v1349
          %1369 = vmatpush.msra.mxu0 %v1345
          %1370 = vmatpush.msra.mxu0 %v1341
          %1371 = vmatpush.msra.mxu0 %v1337
          %1372 = vmatpush.msra.mxu0 %v1333
          %1373 = vmatpush.msra.mxu0 %v1329
          %1374 = vmatpush.msra.mxu0 %v1325
          %1375 = vmatpush.msra.mxu0 %v1321
          %1376 = vmatpush.msra.mxu0 %v1317
          %1377 = vmatpush.msra.mxu0 %v1313
          %1378 = vmatpush.msra.mxu0 %v1309
          %1379 = vmatpush.msra.mxu0 %v1305
          %1380 = vmatpush.msra.mxu0 %v1301
          %1381 = vmatpush.msra.mxu0 %v1297
          %1382 = vmatpush.msra.mxu0 %v1293
          %1383 = vmatmul.f32.gmra.mxu0 %v1292
          %v1384 = vpop.f32.mrf.mxu0
          %v1385 = vadd.f32 %v1359, %v1384
          %1386 = vdwg.mxu0
          %1387 = vmatpush.msra.mxu0 %v1354
          %1388 = vmatpush.msra.mxu0 %v1350
          %1389 = vmatpush.msra.mxu0 %v1346
          %1390 = vmatpush.msra.mxu0 %v1342
          %1391 = vmatpush.msra.mxu0 %v1338
          %1392 = vmatpush.msra.mxu0 %v1334
          %1393 = vmatpush.msra.mxu0 %v1330
          %1394 = vmatpush.msra.mxu0 %v1326
          %1395 = vmatpush.msra.mxu0 %v1322
          %1396 = vmatpush.msra.mxu0 %v1318
          %1397 = vmatpush.msra.mxu0 %v1314
          %1398 = vmatpush.msra.mxu0 %v1310
          %1399 = vmatpush.msra.mxu0 %v1306
          %1400 = vmatpush.msra.mxu0 %v1302
          %1401 = vmatpush.msra.mxu0 %v1298
          %1402 = vmatpush.msra.mxu0 %v1294
          %1403 = vmatmul.f32.gmra.mxu0 %v1292
          %v1404 = vpop.f32.mrf.mxu0
          %v1405 = vadd.f32 %v1360, %v1404
          %1406 = vdwg.mxu0
          %1407 = vmatpush.msra.mxu0 %v1355
          %1408 = vmatpush.msra.mxu0 %v1351
          %1409 = vmatpush.msra.mxu0 %v1347
          %1410 = vmatpush.msra.mxu0 %v1343
          %1411 = vmatpush.msra.mxu0 %v1339
          %1412 = vmatpush.msra.mxu0 %v1335
          %1413 = vmatpush.msra.mxu0 %v1331
          %1414 = vmatpush.msra.mxu0 %v1327
          %1415 = vmatpush.msra.mxu0 %v1323
          %1416 = vmatpush.msra.mxu0 %v1319
          %1417 = vmatpush.msra.mxu0 %v1315
          %1418 = vmatpush.msra.mxu0 %v1311
          %1419 = vmatpush.msra.mxu0 %v1307
          %1420 = vmatpush.msra.mxu0 %v1303
          %1421 = vmatpush.msra.mxu0 %v1299
          %1422 = vmatpush.msra.mxu0 %v1295
          %1423 = vmatmul.f32.gmra.mxu0 %v1292
          %v1424 = vpop.f32.mrf.mxu0
          %v1425 = vadd.f32 %v1361, %v1424
          %1426 = vdwg.mxu0
          %1427 = vmatpush.msra.mxu0 %v1356
          %1428 = vmatpush.msra.mxu0 %v1352
          %1429 = vmatpush.msra.mxu0 %v1348
          %1430 = vmatpush.msra.mxu0 %v1344
          %1431 = vmatpush.msra.mxu0 %v1340
          %1432 = vmatpush.msra.mxu0 %v1336
          %1433 = vmatpush.msra.mxu0 %v1332
          %1434 = vmatpush.msra.mxu0 %v1328
          %1435 = vmatpush.msra.mxu0 %v1324
          %1436 = vmatpush.msra.mxu0 %v1320
          %1437 = vmatpush.msra.mxu0 %v1316
          %1438 = vmatpush.msra.mxu0 %v1312
          %1439 = vmatpush.msra.mxu0 %v1308
          %1440 = vmatpush.msra.mxu0 %v1304
          %1441 = vmatpush.msra.mxu0 %v1300
          %1442 = vmatpush.msra.mxu0 %v1296
          %1443 = vmatmul.f32.gmra.mxu0 %v1292
          %v1444 = vpop.f32.mrf.mxu0
          %v1445 = vadd.f32 %v1362, %v1444
          %1446 = vdwg.mxu0
          %v1447 = vxor.u32 %v1385, 2147483648
          %v1448 = vmul.f32 %v1447, 1.442695
          %v1449 = vpow.pop %v1448
          %v1450 = vadd.f32 %v1449, 1.0
          %v1451 = vrcp.pop %v1450
          %v1452 = vmul.f32 %v1450, %v1451
          %v1453 = vsub.f32 1.0, %v1452
          %v1454 = vmul.f32 %v1451, %v1453
          %v1455 = vadd.f32 %v1451, %v1454
          %vm1456 = vweird.f32 %v1450
          %vm1457 = vweird.f32 %v1451
          %vm1458 = vmor %vm1456, %vm1457
          %v1459 = vsel %vm1458, %v1451, %v1455
          %v1460 = vand.u32 2147483647, %v1450
          %vm1461 = vcmp.eq.f32.partialorder %v1460, 8.507059e+37
          %v1462 = vand.u32 %v1450, 2147483648
          %v1463 = vor.u32 1.1754944e-38, %v1462
          %v1464 = vsel %vm1461, %v1463, %v1459
          %v1465 = vmul.f32 1.0, %v1464
          %v1466 = vxor.u32 %v1405, 2147483648
          %v1467 = vmul.f32 %v1466, 1.442695
          %v1468 = vpow.pop %v1467
          %v1469 = vadd.f32 %v1468, 1.0
          %v1470 = vrcp.pop %v1469
          %v1471 = vmul.f32 %v1469, %v1470
          %v1472 = vsub.f32 1.0, %v1471
          %v1473 = vmul.f32 %v1470, %v1472
          %v1474 = vadd.f32 %v1470, %v1473
          %vm1475 = vweird.f32 %v1469
          %vm1476 = vweird.f32 %v1470
          %vm1477 = vmor %vm1475, %vm1476
          %v1478 = vsel %vm1477, %v1470, %v1474
          %v1479 = vand.u32 2147483647, %v1469
          %vm1480 = vcmp.eq.f32.partialorder %v1479, 8.507059e+37
          %v1481 = vand.u32 %v1469, 2147483648
          %v1482 = vor.u32 1.1754944e-38, %v1481
          %v1483 = vsel %vm1480, %v1482, %v1478
          %v1484 = vmul.f32 1.0, %v1483
          %v1485 = vtanh.pop %v1425
          %v1486 = vxor.u32 %v1445, 2147483648
          %v1487 = vmul.f32 %v1486, 1.442695
          %v1488 = vpow.pop %v1487
          %v1489 = vadd.f32 %v1488, 1.0
          %v1490 = vrcp.pop %v1489
          %v1491 = vmul.f32 %v1489, %v1490
          %v1492 = vsub.f32 1.0, %v1491
          %v1493 = vmul.f32 %v1490, %v1492
          %v1494 = vadd.f32 %v1490, %v1493
          %vm1495 = vweird.f32 %v1489
          %vm1496 = vweird.f32 %v1490
          %vm1497 = vmor %vm1495, %vm1496
          %v1498 = vsel %vm1497, %v1490, %v1494
          %v1499 = vand.u32 2147483647, %v1489
          %vm1500 = vcmp.eq.f32.partialorder %v1499, 8.507059e+37
          %v1501 = vand.u32 %v1489, 2147483648
          %v1502 = vor.u32 1.1754944e-38, %v1501
          %v1503 = vsel %vm1500, %v1502, %v1498
          %v1504 = vmul.f32 1.0, %v1503
          %v1505 = vmul.f32 %v1484, 0.0
          %v1506 = vmul.f32 %v1465, %v1485
          %v1507 = vadd.f32 %v1505, %v1506
          %v1508 = vtanh.pop %v1507
          %v1509 = vmul.f32 %v1504, %v1508
          %v1510 = vld [vmem:[#allocation3] sm:$0xff]
          %v1511 = vld [vmem:[#allocation14] sm:$0xff]
          %v1512 = vld [vmem:[#allocation14 + $0x8] sm:$0xff]
          %v1513 = vld [vmem:[#allocation14 + $0x10] sm:$0xff]
          %v1514 = vld [vmem:[#allocation14 + $0x18] sm:$0xff]
          %v1515 = vld [vmem:[#allocation14 + $0x20] sm:$0xff]
          %v1516 = vld [vmem:[#allocation14 + $0x28] sm:$0xff]
          %v1517 = vld [vmem:[#allocation14 + $0x30] sm:$0xff]
          %v1518 = vld [vmem:[#allocation14 + $0x38] sm:$0xff]
          %v1519 = vld [vmem:[#allocation14 + $0x40] sm:$0xff]
          %v1520 = vld [vmem:[#allocation14 + $0x48] sm:$0xff]
          %v1521 = vld [vmem:[#allocation14 + $0x50] sm:$0xff]
          %v1522 = vld [vmem:[#allocation14 + $0x58] sm:$0xff]
          %v1523 = vld [vmem:[#allocation14 + $0x60] sm:$0xff]
          %v1524 = vld [vmem:[#allocation14 + $0x68] sm:$0xff]
          %v1525 = vld [vmem:[#allocation14 + $0x70] sm:$0xff]
          %v1526 = vld [vmem:[#allocation14 + $0x78] sm:$0xff]
          %v1527 = vld [vmem:[#allocation14 + $0x80] sm:$0xff]
          %v1528 = vld [vmem:[#allocation14 + $0x88] sm:$0xff]
          %v1529 = vld [vmem:[#allocation14 + $0x90] sm:$0xff]
          %v1530 = vld [vmem:[#allocation14 + $0x98] sm:$0xff]
          %v1531 = vld [vmem:[#allocation14 + $0xa0] sm:$0xff]
          %v1532 = vld [vmem:[#allocation14 + $0xa8] sm:$0xff]
          %v1533 = vld [vmem:[#allocation14 + $0xb0] sm:$0xff]
          %v1534 = vld [vmem:[#allocation14 + $0xb8] sm:$0xff]
          %v1535 = vld [vmem:[#allocation14 + $0xc0] sm:$0xff]
          %v1536 = vld [vmem:[#allocation14 + $0xc8] sm:$0xff]
          %v1537 = vld [vmem:[#allocation14 + $0xd0] sm:$0xff]
          %v1538 = vld [vmem:[#allocation14 + $0xd8] sm:$0xff]
          %v1539 = vld [vmem:[#allocation14 + $0xe0] sm:$0xff]
          %v1540 = vld [vmem:[#allocation14 + $0xe8] sm:$0xff]
          %v1541 = vld [vmem:[#allocation14 + $0xf0] sm:$0xff]
          %v1542 = vld [vmem:[#allocation14 + $0xf8] sm:$0xff]
          %v1543 = vld [vmem:[%s7] sm:$0x1]
          %v1545 = vperm.slane %v1543, 0
          %1547 = vmatpush.msra.mxu0 %v1526
          %1548 = vmatpush.msra.mxu0 %v1525
          %1549 = vmatpush.msra.mxu0 %v1524
          %1550 = vmatpush.msra.mxu0 %v1523
          %1551 = vmatpush.msra.mxu0 %v1522
          %1552 = vmatpush.msra.mxu0 %v1521
          %1553 = vmatpush.msra.mxu0 %v1520
          %1554 = vmatpush.msra.mxu0 %v1519
          %1555 = vmatpush.msra.mxu0 %v1518
          %1556 = vmatpush.msra.mxu0 %v1517
          %1557 = vmatpush.msra.mxu0 %v1516
          %1558 = vmatpush.msra.mxu0 %v1515
          %1559 = vmatpush.msra.mxu0 %v1514
          %1560 = vmatpush.msra.mxu0 %v1513
          %1561 = vmatpush.msra.mxu0 %v1512
          %1562 = vmatpush.msra.mxu0 %v1511
          %1563 = vmatmul.f32.gmra.mxu0 %v1510
          %v1564 = vpop.f32.mrf.mxu0
          %v1565 = vadd.f32 %v1545, %v1564
          %1566 = vdwg.mxu0
          %1567 = vmatpush.msra.mxu0 %v1542
          %1568 = vmatpush.msra.mxu0 %v1541
          %1569 = vmatpush.msra.mxu0 %v1540
          %1570 = vmatpush.msra.mxu0 %v1539
          %1571 = vmatpush.msra.mxu0 %v1538
          %1572 = vmatpush.msra.mxu0 %v1537
          %1573 = vmatpush.msra.mxu0 %v1536
          %1574 = vmatpush.msra.mxu0 %v1535
          %1575 = vmatpush.msra.mxu0 %v1534
          %1576 = vmatpush.msra.mxu0 %v1533
          %1577 = vmatpush.msra.mxu0 %v1532
          %1578 = vmatpush.msra.mxu0 %v1531
          %1579 = vmatpush.msra.mxu0 %v1530
          %1580 = vmatpush.msra.mxu0 %v1529
          %1581 = vmatpush.msra.mxu0 %v1528
          %1582 = vmatpush.msra.mxu0 %v1527
          %1583 = vmatmul.f32.gmra.mxu0 %v1509
          %v1584 = vpop.f32.mrf.mxu0
          %v1585 = vadd.f32 %v1565, %v1584
          %1586 = vdwg.mxu0
          %1587 = vst [vmem:[#allocation16] sm:$0xff] %v1585
        $region84: #{tpu_custom_call.1} parent=51 // pred_fallthru
          _
        // Predicated region
        $region85: #{tpu_custom_call.1} parent=51 // pred_check
          %p1588 = pneg %p212
        $region86: #{tpu_custom_call.1} parent=51 // pred_check_branch
          %1590 = sbr.rel (%p1588) target = $region88
        $region87: #{tpu_custom_call.1} parent=51 // pred_region
          %1592 = vsyncadd [#allocation7], 0
          %s1594 = sshll.u32 [#allocation16], 4
          %s1595 = int_to_ptr.vmem [resolvable:$true] %s1594
          %s1596 = sshll.u32 %s8, 4
          %s1597 = int_to_ptr.hbm [resolvable:$true] %s1596
          %1599 = dma.vmem_to_hbm [thread:$0]  %s1595, 128, %s1597, [#allocation7]
        $region88: #{tpu_custom_call.1} parent=51 // pred_fallthru
          _
        // Predicated region
        $region89: #{tpu_custom_call.1} parent=51 // pred_check
          %p1600 = pneg %p212
        $region90: #{tpu_custom_call.1} parent=51 // pred_check_branch
          %1602 = sbr.rel (%p1600) target = $region92
        $region91: #{tpu_custom_call.1} parent=51 // pred_region
          %1604 = dma.done [#allocation7], 128
        $region92: #{tpu_custom_call.1} parent=51 // pred_fallthru
          _
      $region52: #{tpu_custom_call.1} parent=5 // pred_fallthru
        _
      %p1605 = scmp.le.s32.totalorder 2, %s21
      // Predicated region
      $region93: #{tpu_custom_call.1} parent=5 // pred_check
        %p1606 = pneg %p1605
      $region94: #{tpu_custom_call.1} parent=5 // pred_check_branch
        %1608 = sbr.rel (%p1606) target = $region96
      $region95: #{tpu_custom_call.1} parent=5 // pred_region
        %s1609 = ssub.s32 %s21, 2
      $region96: #{tpu_custom_call.1} parent=5 // pred_fallthru
        _
    $region6: #{tpu_custom_call.1} parent=1 // loop_footer
      %s25 = sadd.s32 1, %s21
    $region7: #{tpu_custom_call.1} parent=1 // loop_footer_branch
      %20 = sbr.rel target = $region3
    $region8: #{tpu_custom_call.1} parent=1 // loop_exit
      _
    %1610 = vsyncpa [#allocation6], 1
    %s1611 = scalar_lea.sflag [#allocation6], 1
    %1612 = vsyncpa %s1611, 1
    %1613 = vsyncpa [#allocation9], 1
    %1614 = vsyncpa [#allocation12], 1
    %1615 = vsyncpa [#allocation15], 1
    %1616 = vsyncpa [#allocation7], 1
    %s1617 = scalar_lea.sflag [#allocation7], 1
    %1618 = vsyncpa %s1617, 1

</llo_original>
